<compile_context>
chip_gen: v6e
topology: v6e:2x2x1
jax: 0.10.0
libtpu: 0.0.40
codegen_flags: <defaults>
</compile_context>

<pallas_src>
import functools

import numpy as np
import jax
import jax.numpy as jnp
from jax import lax
from jax.experimental import pallas as pl
from jax.experimental.pallas import tpu as pltpu

ORDER = ['oven', 'fridge', 'hvac', 'dw', 'mw', 'wm'][:4]
NUM_APPLIANCE = len(ORDER)          # 4
INPUT_DIM = 1
HIDDEN = 32                         # num_hidden
NUM_DIRECTIONS = 1                  # bidirectional=False

_TIME_TILE = 512                    # default time-block size (multiple of 8)
_BATCH_TILE = 128                   # lane-width batch tile for large batches


def _round_up(x, m):
    return (x + m - 1) // m * m


# ---------------------------------------------------------------------------
# Kernel: fused 4-appliance GRU recurrence over one (batch tile, time tile).
#
# In-kernel layout is time-major / batch-on-lanes:
#   agg_ref : (A_in, Tt, Bt)  per-appliance aggregates (A_in = 1 when AR)
#   out_ref : (A,    Tt, Bt)  per-appliance predictions
#   h_scr   : (A*H,  Bt)      hidden states, carried across time blocks
# Fused parameters (built in _pack_params):
#   w_hh_ref: (A*3H, A*H)     block-diagonal, pre-transposed hidden weights
#   b_hh_ref/w_ih_ref/b_ih_ref: (A*3H, 1)
#   w_lin_ref: (A*H, 1)       b_lin_ref: (A, 1)
# ---------------------------------------------------------------------------
def _appliances_kernel(agg_ref, w_hh_ref, b_hh_ref, w_ih_ref, b_ih_ref,
                       w_lin_ref, b_lin_ref, out_ref, h_scr,
                       *, T, H, A, Tt, Bt, autoregressive):
    G = A * 3 * H                       # fused gate rows   (384 for H=32)
    K = A * H                           # fused hidden cols (128 for H=32)
    tb = pl.program_id(1)

    # (re)initialize the carried hidden state at the first time block of each
    # batch block (time is the inner, sequential grid axis).
    @pl.when(tb == 0)
    def _():
        h_scr[...] = jnp.zeros_like(h_scr)

    n_real = jnp.minimum(Tt, T - tb * Tt)   # valid timesteps in this block

    # keep padded timesteps of the output block at exactly zero
    @pl.when(n_real < Tt)
    def _():
        out_ref[...] = jnp.zeros_like(out_ref)

    # Loop-invariant lane-broadcasts of the parameter vectors, hoisted out of
    # the recurrence (JAX does not CSE broadcast_in_dim inside the loop).
    w_hh = w_hh_ref[...]                                    # (G, K) block-diag
    b_hh = jnp.broadcast_to(b_hh_ref[...], (G, Bt))
    w_ih = jnp.broadcast_to(w_ih_ref[...], (G, Bt))
    b_ih = jnp.broadcast_to(b_ih_ref[...], (G, Bt))
    w_lin = jnp.broadcast_to(w_lin_ref[...], (K, Bt))
    b_lin = jnp.broadcast_to(b_lin_ref[...], (A, Bt))

    def step(t, carry):
        h_all = h_scr[...]                                  # (K, Bt)
        # ONE fused block-diagonal MXU dot per timestep: gate pre-activations
        # of all four appliances with a K = 4H = 128 contraction.
        # (f32 inputs kept for accuracy of the long recurrence.)
        gh = jnp.dot(w_hh, h_all, preferred_element_type=jnp.float32) + b_hh
        if autoregressive:
            x = agg_ref[0, pl.ds(t, 1), :]                  # (1, Bt) aggregate
        for a in range(A):                                  # tiny static loop
            if not autoregressive:
                # teacher forcing: per-appliance aggregate precomputed in the
                # wrapper (agg - cumulative ground truth)
                x = agg_ref[a, pl.ds(t, 1), :]
            lo = a * 3 * H
            # input projection is rank-1 (input_size == 1): pure VPU work that
            # hides under the MXU/EUP latency of the step
            gi = w_ih[lo:lo + 3 * H] * x + b_ih[lo:lo + 3 * H]      # (3H, Bt)
            gha = gh[lo:lo + 3 * H]
            rz = jax.nn.sigmoid(gi[:2 * H] + gha[:2 * H])
            r = rz[:H]
            z = rz[H:]
            n = jnp.tanh(gi[2 * H:] + r * gha[2 * H:])
            h_a = (1.0 - z) * n + z * h_all[a * H:(a + 1) * H]
            h_scr[a * H:(a + 1) * H, :] = h_a
            # output Linear head: 32-wide VPU multiply + sublane reduce (XLU),
            # then clamp(min=0) and min(pred, x); kept in-step so the AR
            # aggregate cascade needs no extra pass over the sequence.
            head = jnp.sum(w_lin[a * H:(a + 1) * H] * h_a, axis=0,
                           keepdims=True) + b_lin[a:a + 1]
            pred = jnp.minimum(jnp.maximum(head, 0.0), x)   # (1, Bt)
            out_ref[a, pl.ds(t, 1), :] = pred               # dense row store
            if autoregressive:
                x = x - pred                                # in-step cascade
        return carry

    lax.fori_loop(0, n_real, step, 0)


# ---------------------------------------------------------------------------
# Parameter packing: block-diagonal, pre-transposed fused weights.
# ---------------------------------------------------------------------------
def _pack_params(params):
    w_ih, w_hh, b_ih, b_hh, w_lin, b_lin = params
    A = w_ih.shape[0]
    H = w_ih.shape[-1]
    G = A * 3 * H
    K = A * H
    rows = []
    for a in range(A):
        # (3, H, H)[g, i, j] -> (3H, H) rows g*H+j, cols i  (transposed so the
        # recurrence is gh = W_blk @ h with hidden on sublanes)
        blk = jnp.transpose(w_hh[a], (0, 2, 1)).reshape(3 * H, H)
        rows.append(jnp.pad(blk, ((0, 0), (a * H, (A - 1 - a) * H))))
    w_hh_blk = jnp.concatenate(rows, axis=0).astype(jnp.float32)     # (G, K)
    b_hh_all = b_hh.reshape(G, 1).astype(jnp.float32)
    w_ih_all = w_ih.reshape(G, 1).astype(jnp.float32)
    b_ih_all = b_ih.reshape(G, 1).astype(jnp.float32)
    w_lin_all = w_lin.reshape(K, 1).astype(jnp.float32)
    b_lin_all = b_lin.reshape(A, 1).astype(jnp.float32)
    return w_hh_blk, b_hh_all, w_ih_all, b_ih_all, w_lin_all, b_lin_all


def _vmem_limit_bytes(A_in, A, Tt, Bt, H):
    """Derived VMEM budget: double-buffered I/O blocks + carried state +
    fused weights + hoisted broadcasts, plus headroom for compiler scratch."""
    f32 = 4
    io_blocks = f32 * (A_in + A) * Tt * Bt * 2      # 2x-buffered agg in + pred out
    h_state = f32 * A * H * Bt
    weights = 2 * f32 * (A * 3 * H) * (A * H + 3) + 2 * f32 * (A * H + A)
    bcasts = f32 * Bt * (4 * A * 3 * H + A * H + A)  # hoisted broadcasts + gh temp
    headroom = 16 << 20
    return int(min(48 << 20, io_blocks + h_state + weights + bcasts + headroom))


# ---------------------------------------------------------------------------
# Forward pass (compile-time teacher-forcing flag).
# ---------------------------------------------------------------------------
def _forward_impl(agg, dw, oven, fridge, hvac, params, *, flag, time_tile):
    B, T, _ = agg.shape
    A, _, _, H = params[0].shape
    G = A * 3 * H
    K = A * H

    # ---- tile sizes -------------------------------------------------------
    # batch is the lane axis: tiles must be 128 wide or the full batch
    if B > _BATCH_TILE:
        Bt = _BATCH_TILE
        Bp = _round_up(B, Bt)
    else:
        Bt = Bp = B
    # TODO(synk): for B <= 128 there is only one (parallel) batch block, so one
    # of v7x's two TensorCores idles on the AR path; a batch-on-sublane layout
    # (or pl.core_map split) would recover it for small batches.
    Tt = _round_up(min(int(time_tile), _round_up(T, 8)), 8)
    Tp = _round_up(T, Tt)
    nb = Bp // Bt
    nt = Tp // Tt

    x = agg[..., 0]                                          # (B, T)
    if flag:
        aggs = x[None]                                       # autoregressive
    else:
        # teacher forcing: appliance a sees agg - sum_{j<a} truth_j, so the 4
        # recurrences only couple through these precomputed aggregates
        truths = jnp.stack([oven[..., 0], fridge[..., 0],
                            hvac[..., 0], dw[..., 0]], axis=0)   # ORDER order
        csum = jnp.cumsum(truths, axis=0)
        aggs = jnp.concatenate([x[None], x[None] - csum[:-1]], axis=0)
    A_in = aggs.shape[0]

    # pad + switch to the in-kernel time-major layout once, in the wrapper
    aggs = jnp.pad(aggs, ((0, 0), (0, Bp - B), (0, Tp - T)))
    aggs = jnp.transpose(aggs, (0, 2, 1)).astype(jnp.float32)    # (A_in, Tp, Bp)

    fused = _pack_params(params)

    kernel = functools.partial(_appliances_kernel, T=T, H=H, A=A,
                               Tt=Tt, Bt=Bt, autoregressive=flag)

    def _full(shape):
        return pl.BlockSpec(shape, lambda b, t: (0,) * len(shape))

    out = pl.pallas_call(
        kernel,
        out_shape=jax.ShapeDtypeStruct((A, Tp, Bp), jnp.float32),
        grid_spec=pltpu.PrefetchScalarGridSpec(
            num_scalar_prefetch=0,
            grid=(nb, nt),                        # time innermost, sequential
            in_specs=[
                pl.BlockSpec((A_in, Tt, Bt), lambda b, t: (0, t, b)),
                _full((G, K)),
                _full((G, 1)),
                _full((G, 1)),
                _full((G, 1)),
                _full((K, 1)),
                _full((A, 1)),
            ],
            out_specs=pl.BlockSpec((A, Tt, Bt), lambda b, t: (0, t, b)),
            scratch_shapes=[pltpu.VMEM((K, Bt), jnp.float32)],   # carried h
        ),
        compiler_params=pltpu.CompilerParams(
            dimension_semantics=("parallel", "arbitrary"),
            vmem_limit_bytes=_vmem_limit_bytes(A_in, A, Tt, Bt, H)),
    )(aggs, *fused)

    # (A, Tp, Bp) time-major -> torch.cat of per-appliance (B, T, 1) preds
    out = jnp.transpose(out, (0, 2, 1))[:, :B, :T]
    return out.reshape(A * B, T, 1)


_forward_jit = jax.jit(_forward_impl, static_argnames=("flag", "time_tile"))


def _forward_with_flag(agg, dw, oven, fridge, hvac, params, flag,
                       time_tile=_TIME_TILE):
    """flag=True  -> subtract the model's own predictions (autoregressive)
       flag=False -> subtract the ground-truth appliance signals (teacher forcing)"""
    return _forward_jit(agg, dw, oven, fridge, hvac, params,
                        flag=bool(flag), time_tile=int(time_tile))


def appliances_rnn_forward(agg, dw, oven, fridge, hvac, p, params, seed=0):
    """agg/dw/oven/fridge/hvac : (B, T, 1) float32.  Returns (A*B, T, 1)."""
    np.random.seed(seed)
    flag = bool(np.random.random() > p)       # host-side draw, like the torch code
    return _forward_with_flag(agg, dw, oven, fridge, hvac, params, flag)


def init_params(key, hidden=HIDDEN, num_appliance=NUM_APPLIANCE):
    """Deterministic init mimicking PyTorch U(-1/sqrt(H), 1/sqrt(H)).
    w_hh is stored pre-transposed so the recurrence is `h @ W`."""
    k = 1.0 / np.sqrt(hidden)
    keys = jax.random.split(key, 6)
    shapes = [
        (num_appliance, 3, 1, hidden),        # w_ih  (input_size = 1)
        (num_appliance, 3, hidden, hidden),   # w_hh
        (num_appliance, 3, 1, hidden),        # b_ih
        (num_appliance, 3, 1, hidden),        # b_hh
        (num_appliance, hidden, 1),           # w_lin
        (num_appliance, 1, 1),                # b_lin
    ]
    return tuple(jax.random.uniform(kk, s, jnp.float32, -k, k)
                 for kk, s in zip(keys, shapes))


def _reference_forward(agg, dw, oven, fridge, hvac, params, flag):
    """Pure-numpy reference mirroring the PyTorch semantics (for verification)."""
    w_ih, w_hh, b_ih, b_hh, w_lin, b_lin = (np.asarray(v) for v in params)
    x = np.asarray(agg[..., 0])
    truths = [np.asarray(t[..., 0]) for t in (oven, fridge, hvac, dw)]
    A = w_ih.shape[0]
    B, T = x.shape
    H = w_hh.shape[-1]
    sig = lambda v: 1.0 / (1.0 + np.exp(-v))
    preds = []
    cur = x.copy()
    for a in range(A):
        h = np.zeros((B, H), np.float32)
        cols = []
        for t in range(T):
            x_t = cur[:, t:t + 1]
            gi = [x_t * w_ih[a, g] + b_ih[a, g] for g in range(3)]
            gh = [h @ w_hh[a, g] + b_hh[a, g] for g in range(3)]
            r = sig(gi[0] + gh[0])
            z = sig(gi[1] + gh[1])
            n = np.tanh(gi[2] + r * gh[2])
            h = (1.0 - z) * n + z * h
            o = h @ w_lin[a] + b_lin[a]
            o = np.minimum(np.maximum(o, 0.0), x_t)
            cols.append(o)
        pred = np.concatenate(cols, axis=1)
        preds.append(pred)
        cur = cur - (pred if flag else truths[a])
    return np.concatenate(preds, axis=0).reshape(A * B, T, 1)


if __name__ == "__main__":
    key = jax.random.PRNGKey(0)
    k_par, k_in1, k_in2 = jax.random.split(key, 3)
    params = init_params(k_par)

    def make_inputs(B, T, k):
        ks = jax.random.split(k, 5)
        agg = jax.random.uniform(ks[0], (B, T, 1), jnp.float32, 0.5, 2.0)
        dw = jax.random.uniform(ks[1], (B, T, 1), jnp.float32, 0.0, 0.3)
        oven = jax.random.uniform(ks[2], (B, T, 1), jnp.float32, 0.0, 0.3)
        fridge = jax.random.uniform(ks[3], (B, T, 1), jnp.float32, 0.0, 0.3)
        hvac = jax.random.uniform(ks[4], (B, T, 1), jnp.float32, 0.0, 0.3)
        return agg, dw, oven, fridge, hvac

    # config 1: module-default small shapes, both compile-time flag variants
    B, T = 2, 8
    inputs = make_inputs(B, T, k_in1)
    for flag in (True, False):
        out = jax.block_until_ready(_forward_with_flag(*inputs, params, flag))
        ref = _reference_forward(*inputs, params, flag)
        assert out.shape == (NUM_APPLIANCE * B, T, 1), out.shape
        assert np.allclose(np.asarray(out), ref, atol=5e-4, rtol=2e-3), \
            "mismatch vs reference (flag=%s)" % flag

    # config 2: several time blocks + ragged tail (exercises the carried
    # hidden state and padded-timestep masking), both flag variants
    B2, T2 = 3, 20
    inputs2 = make_inputs(B2, T2, k_in2)
    for flag in (True, False):
        out = jax.block_until_ready(
            _forward_with_flag(*inputs2, params, flag, time_tile=8))
        ref = _reference_forward(*inputs2, params, flag)
        assert out.shape == (NUM_APPLIANCE * B2, T2, 1), out.shape
        assert np.allclose(np.asarray(out), ref, atol=5e-4, rtol=2e-3), \
            "mismatch vs reference (flag=%s, blocked time)" % flag

    # public entry point: draws the teacher-forcing flag like the torch module
    out = jax.block_until_ready(appliances_rnn_forward(*inputs, 0.5, params))
    assert out.shape == (NUM_APPLIANCE * B, T, 1)

    print("KERNEL_OK")
</pallas_src>

<mosaic_0001>
module attributes {stable_mosaic.version = 11 : i64} {
  func.func @_appliances_kernel(%arg0: i32, %arg1: i32, %arg2: memref<1x8x2xf32, #tpu.memory_space<vmem>>, %arg3: memref<384x128xf32, #tpu.memory_space<vmem>>, %arg4: memref<384x1xf32, #tpu.memory_space<vmem>>, %arg5: memref<384x1xf32, #tpu.memory_space<vmem>>, %arg6: memref<384x1xf32, #tpu.memory_space<vmem>>, %arg7: memref<128x1xf32, #tpu.memory_space<vmem>>, %arg8: memref<4x1xf32, #tpu.memory_space<vmem>>, %arg9: memref<4x8x2xf32, #tpu.memory_space<vmem>>, %arg10: memref<128x2xf32, #tpu.memory_space<vmem>>) attributes {dimension_semantics = [#tpu.dimension_semantics<parallel>, #tpu.dimension_semantics<arbitrary>], iteration_bounds = array<i64: 1, 1>, scalar_prefetch = 0 : i64, scratch_operands = 1 : i64, tpu.core_type = #tpu.core_type<tc>, window_params = [{transform_indices = @transform_0, window_bounds = array<i64: 1, 8, 2>}, {pipeline_mode = #tpu.pipeline_mode<synchronous>, transform_indices = @transform_1, window_bounds = array<i64: 384, 128>}, {pipeline_mode = #tpu.pipeline_mode<synchronous>, transform_indices = @transform_2, window_bounds = array<i64: 384, 1>}, {pipeline_mode = #tpu.pipeline_mode<synchronous>, transform_indices = @transform_3, window_bounds = array<i64: 384, 1>}, {pipeline_mode = #tpu.pipeline_mode<synchronous>, transform_indices = @transform_4, window_bounds = array<i64: 384, 1>}, {pipeline_mode = #tpu.pipeline_mode<synchronous>, transform_indices = @transform_5, window_bounds = array<i64: 128, 1>}, {pipeline_mode = #tpu.pipeline_mode<synchronous>, transform_indices = @transform_6, window_bounds = array<i64: 4, 1>}, {transform_indices = @transform_7, window_bounds = array<i64: 4, 8, 2>}]} {
    %c0_i32 = arith.constant 0 : i32
    %0 = arith.cmpi eq, %arg1, %c0_i32 : i32
    %1 = arith.extui %0 : i1 to i32
    %c0_i32_0 = arith.constant 0 : i32
    %2 = arith.cmpi ne, %1, %c0_i32_0 : i32
    scf.if %2 {
      %cst = arith.constant 0.000000e+00 : f32
      %27 = vector.broadcast %cst : f32 to vector<128x2xf32>
      %c0_18 = arith.constant 0 : index
      %c0_19 = arith.constant 0 : index
      %28 = vector.load %arg10[%c0_18, %c0_19] : memref<128x2xf32, #tpu.memory_space<vmem>>, vector<128x2xf32>
      tpu.vector_store %arg10[%c0_18, %c0_19], %27 {strides = array<i32>} : memref<128x2xf32, #tpu.memory_space<vmem>>, vector<128x2xf32>,
    } else {
    }
    %c8_i32 = arith.constant 8 : i32
    %3 = arith.muli %arg1, %c8_i32 : i32
    %c8_i32_1 = arith.constant 8 : i32
    %4 = arith.subi %c8_i32_1, %3 : i32
    %c8_i32_2 = arith.constant 8 : i32
    %5 = arith.minsi %c8_i32_2, %4 : i32
    %c8_i32_3 = arith.constant 8 : i32
    %6 = arith.cmpi slt, %5, %c8_i32_3 : i32
    %7 = arith.extui %6 : i1 to i32
    %c0_i32_4 = arith.constant 0 : i32
    %8 = arith.cmpi ne, %7, %c0_i32_4 : i32
    scf.if %8 {
      %cst = arith.constant 0.000000e+00 : f32
      %27 = vector.broadcast %cst : f32 to vector<4x8x2xf32>
      %c0_18 = arith.constant 0 : index
      %c0_19 = arith.constant 0 : index
      %c0_20 = arith.constant 0 : index
      %28 = vector.load %arg9[%c0_18, %c0_19, %c0_20] : memref<4x8x2xf32, #tpu.memory_space<vmem>>, vector<4x8x2xf32>
      tpu.vector_store %arg9[%c0_18, %c0_19, %c0_20], %27 {strides = array<i32>} : memref<4x8x2xf32, #tpu.memory_space<vmem>>, vector<4x8x2xf32>,
    } else {
    }
    %c0 = arith.constant 0 : index
    %c0_5 = arith.constant 0 : index
    %9 = vector.load %arg3[%c0, %c0_5] : memref<384x128xf32, #tpu.memory_space<vmem>>, vector<384x128xf32>
    %c0_6 = arith.constant 0 : index
    %c0_7 = arith.constant 0 : index
    %10 = vector.load %arg4[%c0_6, %c0_7] : memref<384x1xf32, #tpu.memory_space<vmem>>, vector<384x1xf32>
    %11 = vector.shape_cast %10 : vector<384x1xf32> to vector<384x1xf32>
    %12 = vector.broadcast %11 : vector<384x1xf32> to vector<384x2xf32>
    %c0_8 = arith.constant 0 : index
    %c0_9 = arith.constant 0 : index
    %13 = vector.load %arg5[%c0_8, %c0_9] : memref<384x1xf32, #tpu.memory_space<vmem>>, vector<384x1xf32>
    %14 = vector.shape_cast %13 : vector<384x1xf32> to vector<384x1xf32>
    %15 = vector.broadcast %14 : vector<384x1xf32> to vector<384x2xf32>
    %c0_10 = arith.constant 0 : index
    %c0_11 = arith.constant 0 : index
    %16 = vector.load %arg6[%c0_10, %c0_11] : memref<384x1xf32, #tpu.memory_space<vmem>>, vector<384x1xf32>
    %17 = vector.shape_cast %16 : vector<384x1xf32> to vector<384x1xf32>
    %18 = vector.broadcast %17 : vector<384x1xf32> to vector<384x2xf32>
    %c0_12 = arith.constant 0 : index
    %c0_13 = arith.constant 0 : index
    %19 = vector.load %arg7[%c0_12, %c0_13] : memref<128x1xf32, #tpu.memory_space<vmem>>, vector<128x1xf32>
    %20 = vector.shape_cast %19 : vector<128x1xf32> to vector<128x1xf32>
    %21 = vector.broadcast %20 : vector<128x1xf32> to vector<128x2xf32>
    %c0_14 = arith.constant 0 : index
    %c0_15 = arith.constant 0 : index
    %22 = vector.load %arg8[%c0_14, %c0_15] : memref<4x1xf32, #tpu.memory_space<vmem>>, vector<4x1xf32>
    %23 = vector.shape_cast %22 : vector<4x1xf32> to vector<4x1xf32>
    %24 = vector.broadcast %23 : vector<4x1xf32> to vector<4x2xf32>
    %c0_i32_16 = arith.constant 0 : i32
    %c0_i32_17 = arith.constant 0 : i32
    %25 = arith.subi %5, %c0_i32_17 : i32
    %26 = arith.addi %c0_i32_17, %25 : i32
    %c1_i32 = arith.constant 1 : i32
    scf.for %arg11 = %c0_i32_17 to %26 step %c1_i32  : i32 {
      %c0_18 = arith.constant 0 : index
      %c0_19 = arith.constant 0 : index
      %27 = vector.load %arg10[%c0_18, %c0_19] : memref<128x2xf32, #tpu.memory_space<vmem>>, vector<128x2xf32>
      %cst = arith.constant dense<0.000000e+00> : vector<384x2xf32>
      %28 = tpu.matmul %9, %27, %cst {dimension_numbers = #tpu.dot_dimension_numbers<[1], [0], [0], [1], [0, 0, 1, 1], [], []>} : vector<384x128xf32>, vector<128x2xf32>, vector<384x2xf32> -> vector<384x2xf32>
      %29 = arith.addf %28, %12 : vector<384x2xf32>
      %c0_20 = arith.constant 0 : index
      %30 = arith.index_cast %arg11 : i32 to index
      %c0_21 = arith.constant 0 : index
      %31 = vector.load %arg2[%c0_20, %30, %c0_21] : memref<1x8x2xf32, #tpu.memory_space<vmem>>, vector<1x1x2xf32>
      %32 = vector.shape_cast %31 : vector<1x1x2xf32> to vector<1x2xf32>
      %33 = vector.extract_strided_slice %15 {offsets = [0, 0], sizes = [96, 2], strides = [1, 1]} : vector<384x2xf32> to vector<96x2xf32>
      %34 = vector.broadcast %32 : vector<1x2xf32> to vector<96x2xf32>
      %35 = arith.mulf %33, %34 : vector<96x2xf32>
      %36 = vector.extract_strided_slice %18 {offsets = [0, 0], sizes = [96, 2], strides = [1, 1]} : vector<384x2xf32> to vector<96x2xf32>
      %37 = arith.addf %35, %36 : vector<96x2xf32>
      %38 = vector.extract_strided_slice %29 {offsets = [0, 0], sizes = [96, 2], strides = [1, 1]} : vector<384x2xf32> to vector<96x2xf32>
      %39 = vector.extract_strided_slice %37 {offsets = [0, 0], sizes = [64, 2], strides = [1, 1]} : vector<96x2xf32> to vector<64x2xf32>
      %40 = vector.extract_strided_slice %38 {offsets = [0, 0], sizes = [64, 2], strides = [1, 1]} : vector<96x2xf32> to vector<64x2xf32>
      %41 = arith.addf %39, %40 : vector<64x2xf32>
      %42 = arith.negf %41 : vector<64x2xf32>
      %43 = math.exp %42 : vector<64x2xf32>
      %cst_22 = arith.constant 1.000000e+00 : f32
      %44 = vector.broadcast %cst_22 : f32 to vector<64x2xf32>
      %45 = arith.addf %44, %43 : vector<64x2xf32>
      %46 = arith.divf %44, %45 : vector<64x2xf32>
      %47 = vector.extract_strided_slice %46 {offsets = [0, 0], sizes = [32, 2], strides = [1, 1]} : vector<64x2xf32> to vector<32x2xf32>
      %48 = vector.extract_strided_slice %46 {offsets = [32, 0], sizes = [32, 2], strides = [1, 1]} : vector<64x2xf32> to vector<32x2xf32>
      %49 = vector.extract_strided_slice %37 {offsets = [64, 0], sizes = [32, 2], strides = [1, 1]} : vector<96x2xf32> to vector<32x2xf32>
      %50 = vector.extract_strided_slice %38 {offsets = [64, 0], sizes = [32, 2], strides = [1, 1]} : vector<96x2xf32> to vector<32x2xf32>
      %51 = arith.mulf %47, %50 : vector<32x2xf32>
      %52 = arith.addf %49, %51 : vector<32x2xf32>
      %53 = math.tanh %52 : vector<32x2xf32>
      %cst_23 = arith.constant 1.000000e+00 : f32
      %54 = vector.broadcast %cst_23 : f32 to vector<32x2xf32>
      %55 = arith.subf %54, %48 : vector<32x2xf32>
      %56 = arith.mulf %55, %53 : vector<32x2xf32>
      %57 = vector.extract_strided_slice %27 {offsets = [0, 0], sizes = [32, 2], strides = [1, 1]} : vector<128x2xf32> to vector<32x2xf32>
      %58 = arith.mulf %48, %57 : vector<32x2xf32>
      %59 = arith.addf %56, %58 : vector<32x2xf32>
      %c0_24 = arith.constant 0 : index
      %c0_25 = arith.constant 0 : index
      %60 = vector.load %arg10[%c0_24, %c0_25] : memref<128x2xf32, #tpu.memory_space<vmem>>, vector<32x2xf32>
      tpu.vector_store %arg10[%c0_24, %c0_25], %59 {strides = array<i32>} : memref<128x2xf32, #tpu.memory_space<vmem>>, vector<32x2xf32>,
      %61 = vector.extract_strided_slice %21 {offsets = [0, 0], sizes = [32, 2], strides = [1, 1]} : vector<128x2xf32> to vector<32x2xf32>
      %62 = arith.mulf %61, %59 : vector<32x2xf32>
      %cst_26 = arith.constant dense<0.000000e+00> : vector<2xf32>
      %63 = vector.multi_reduction <add>, %62, %cst_26 [0] : vector<32x2xf32> to vector<2xf32>
      %64 = vector.shape_cast %63 : vector<2xf32> to vector<1x2xf32>
      %65 = vector.extract_strided_slice %24 {offsets = [0, 0], sizes = [1, 2], strides = [1, 1]} : vector<4x2xf32> to vector<1x2xf32>
      %66 = arith.addf %64, %65 : vector<1x2xf32>
      %cst_27 = arith.constant 0.000000e+00 : f32
      %67 = vector.broadcast %cst_27 : f32 to vector<1x2xf32>
      %68 = arith.maximumf %66, %67 : vector<1x2xf32>
      %69 = arith.minimumf %68, %32 : vector<1x2xf32>
      %c0_28 = arith.constant 0 : index
      %70 = arith.index_cast %arg11 : i32 to index
      %c0_29 = arith.constant 0 : index
      %71 = vector.load %arg9[%c0_28, %70, %c0_29] : memref<4x8x2xf32, #tpu.memory_space<vmem>>, vector<1x1x2xf32>
      %72 = vector.shape_cast %71 : vector<1x1x2xf32> to vector<1x2xf32>
      %73 = vector.shape_cast %69 : vector<1x2xf32> to vector<1x1x2xf32>
      tpu.vector_store %arg9[%c0_28, %70, %c0_29], %73 {strides = array<i32>} : memref<4x8x2xf32, #tpu.memory_space<vmem>>, vector<1x1x2xf32>,
      %74 = arith.subf %32, %69 : vector<1x2xf32>
      %75 = vector.extract_strided_slice %15 {offsets = [96, 0], sizes = [96, 2], strides = [1, 1]} : vector<384x2xf32> to vector<96x2xf32>
      %76 = vector.broadcast %74 : vector<1x2xf32> to vector<96x2xf32>
      %77 = arith.mulf %75, %76 : vector<96x2xf32>
      %78 = vector.extract_strided_slice %18 {offsets = [96, 0], sizes = [96, 2], strides = [1, 1]} : vector<384x2xf32> to vector<96x2xf32>
      %79 = arith.addf %77, %78 : vector<96x2xf32>
      %80 = vector.extract_strided_slice %29 {offsets = [96, 0], sizes = [96, 2], strides = [1, 1]} : vector<384x2xf32> to vector<96x2xf32>
      %81 = vector.extract_strided_slice %79 {offsets = [0, 0], sizes = [64, 2], strides = [1, 1]} : vector<96x2xf32> to vector<64x2xf32>
      %82 = vector.extract_strided_slice %80 {offsets = [0, 0], sizes = [64, 2], strides = [1, 1]} : vector<96x2xf32> to vector<64x2xf32>
      %83 = arith.addf %81, %82 : vector<64x2xf32>
      %84 = arith.negf %83 : vector<64x2xf32>
      %85 = math.exp %84 : vector<64x2xf32>
      %cst_30 = arith.constant 1.000000e+00 : f32
      %86 = vector.broadcast %cst_30 : f32 to vector<64x2xf32>
      %87 = arith.addf %86, %85 : vector<64x2xf32>
      %88 = arith.divf %86, %87 : vector<64x2xf32>
      %89 = vector.extract_strided_slice %88 {offsets = [0, 0], sizes = [32, 2], strides = [1, 1]} : vector<64x2xf32> to vector<32x2xf32>
      %90 = vector.extract_strided_slice %88 {offsets = [32, 0], sizes = [32, 2], strides = [1, 1]} : vector<64x2xf32> to vector<32x2xf32>
      %91 = vector.extract_strided_slice %79 {offsets = [64, 0], sizes = [32, 2], strides = [1, 1]} : vector<96x2xf32> to vector<32x2xf32>
      %92 = vector.extract_strided_slice %80 {offsets = [64, 0], sizes = [32, 2], strides = [1, 1]} : vector<96x2xf32> to vector<32x2xf32>
      %93 = arith.mulf %89, %92 : vector<32x2xf32>
      %94 = arith.addf %91, %93 : vector<32x2xf32>
      %95 = math.tanh %94 : vector<32x2xf32>
      %cst_31 = arith.constant 1.000000e+00 : f32
      %96 = vector.broadcast %cst_31 : f32 to vector<32x2xf32>
      %97 = arith.subf %96, %90 : vector<32x2xf32>
      %98 = arith.mulf %97, %95 : vector<32x2xf32>
      %99 = vector.extract_strided_slice %27 {offsets = [32, 0], sizes = [32, 2], strides = [1, 1]} : vector<128x2xf32> to vector<32x2xf32>
      %100 = arith.mulf %90, %99 : vector<32x2xf32>
      %101 = arith.addf %98, %100 : vector<32x2xf32>
      %c32 = arith.constant 32 : index
      %c0_32 = arith.constant 0 : index
      %102 = vector.load %arg10[%c32, %c0_32] : memref<128x2xf32, #tpu.memory_space<vmem>>, vector<32x2xf32>
      tpu.vector_store %arg10[%c32, %c0_32], %101 {strides = array<i32>} : memref<128x2xf32, #tpu.memory_space<vmem>>, vector<32x2xf32>,
      %103 = vector.extract_strided_slice %21 {offsets = [32, 0], sizes = [32, 2], strides = [1, 1]} : vector<128x2xf32> to vector<32x2xf32>
      %104 = arith.mulf %103, %101 : vector<32x2xf32>
      %cst_33 = arith.constant dense<0.000000e+00> : vector<2xf32>
      %105 = vector.multi_reduction <add>, %104, %cst_33 [0] : vector<32x2xf32> to vector<2xf32>
      %106 = vector.shape_cast %105 : vector<2xf32> to vector<1x2xf32>
      %107 = vector.extract_strided_slice %24 {offsets = [1, 0], sizes = [1, 2], strides = [1, 1]} : vector<4x2xf32> to vector<1x2xf32>
      %108 = arith.addf %106, %107 : vector<1x2xf32>
      %cst_34 = arith.constant 0.000000e+00 : f32
      %109 = vector.broadcast %cst_34 : f32 to vector<1x2xf32>
      %110 = arith.maximumf %108, %109 : vector<1x2xf32>
      %111 = arith.minimumf %110, %74 : vector<1x2xf32>
      %c1 = arith.constant 1 : index
      %112 = arith.index_cast %arg11 : i32 to index
      %c0_35 = arith.constant 0 : index
      %113 = vector.load %arg9[%c1, %112, %c0_35] : memref<4x8x2xf32, #tpu.memory_space<vmem>>, vector<1x1x2xf32>
      %114 = vector.shape_cast %113 : vector<1x1x2xf32> to vector<1x2xf32>
      %115 = vector.shape_cast %111 : vector<1x2xf32> to vector<1x1x2xf32>
      tpu.vector_store %arg9[%c1, %112, %c0_35], %115 {strides = array<i32>} : memref<4x8x2xf32, #tpu.memory_space<vmem>>, vector<1x1x2xf32>,
      %116 = arith.subf %74, %111 : vector<1x2xf32>
      %117 = vector.extract_strided_slice %15 {offsets = [192, 0], sizes = [96, 2], strides = [1, 1]} : vector<384x2xf32> to vector<96x2xf32>
      %118 = vector.broadcast %116 : vector<1x2xf32> to vector<96x2xf32>
      %119 = arith.mulf %117, %118 : vector<96x2xf32>
      %120 = vector.extract_strided_slice %18 {offsets = [192, 0], sizes = [96, 2], strides = [1, 1]} : vector<384x2xf32> to vector<96x2xf32>
      %121 = arith.addf %119, %120 : vector<96x2xf32>
      %122 = vector.extract_strided_slice %29 {offsets = [192, 0], sizes = [96, 2], strides = [1, 1]} : vector<384x2xf32> to vector<96x2xf32>
      %123 = vector.extract_strided_slice %121 {offsets = [0, 0], sizes = [64, 2], strides = [1, 1]} : vector<96x2xf32> to vector<64x2xf32>
      %124 = vector.extract_strided_slice %122 {offsets = [0, 0], sizes = [64, 2], strides = [1, 1]} : vector<96x2xf32> to vector<64x2xf32>
      %125 = arith.addf %123, %124 : vector<64x2xf32>
      %126 = arith.negf %125 : vector<64x2xf32>
      %127 = math.exp %126 : vector<64x2xf32>
      %cst_36 = arith.constant 1.000000e+00 : f32
      %128 = vector.broadcast %cst_36 : f32 to vector<64x2xf32>
      %129 = arith.addf %128, %127 : vector<64x2xf32>
      %130 = arith.divf %128, %129 : vector<64x2xf32>
      %131 = vector.extract_strided_slice %130 {offsets = [0, 0], sizes = [32, 2], strides = [1, 1]} : vector<64x2xf32> to vector<32x2xf32>
      %132 = vector.extract_strided_slice %130 {offsets = [32, 0], sizes = [32, 2], strides = [1, 1]} : vector<64x2xf32> to vector<32x2xf32>
      %133 = vector.extract_strided_slice %121 {offsets = [64, 0], sizes = [32, 2], strides = [1, 1]} : vector<96x2xf32> to vector<32x2xf32>
      %134 = vector.extract_strided_slice %122 {offsets = [64, 0], sizes = [32, 2], strides = [1, 1]} : vector<96x2xf32> to vector<32x2xf32>
      %135 = arith.mulf %131, %134 : vector<32x2xf32>
      %136 = arith.addf %133, %135 : vector<32x2xf32>
      %137 = math.tanh %136 : vector<32x2xf32>
      %cst_37 = arith.constant 1.000000e+00 : f32
      %138 = vector.broadcast %cst_37 : f32 to vector<32x2xf32>
      %139 = arith.subf %138, %132 : vector<32x2xf32>
      %140 = arith.mulf %139, %137 : vector<32x2xf32>
      %141 = vector.extract_strided_slice %27 {offsets = [64, 0], sizes = [32, 2], strides = [1, 1]} : vector<128x2xf32> to vector<32x2xf32>
      %142 = arith.mulf %132, %141 : vector<32x2xf32>
      %143 = arith.addf %140, %142 : vector<32x2xf32>
      %c64 = arith.constant 64 : index
      %c0_38 = arith.constant 0 : index
      %144 = vector.load %arg10[%c64, %c0_38] : memref<128x2xf32, #tpu.memory_space<vmem>>, vector<32x2xf32>
      tpu.vector_store %arg10[%c64, %c0_38], %143 {strides = array<i32>} : memref<128x2xf32, #tpu.memory_space<vmem>>, vector<32x2xf32>,
      %145 = vector.extract_strided_slice %21 {offsets = [64, 0], sizes = [32, 2], strides = [1, 1]} : vector<128x2xf32> to vector<32x2xf32>
      %146 = arith.mulf %145, %143 : vector<32x2xf32>
      %cst_39 = arith.constant dense<0.000000e+00> : vector<2xf32>
      %147 = vector.multi_reduction <add>, %146, %cst_39 [0] : vector<32x2xf32> to vector<2xf32>
      %148 = vector.shape_cast %147 : vector<2xf32> to vector<1x2xf32>
      %149 = vector.extract_strided_slice %24 {offsets = [2, 0], sizes = [1, 2], strides = [1, 1]} : vector<4x2xf32> to vector<1x2xf32>
      %150 = arith.addf %148, %149 : vector<1x2xf32>
      %cst_40 = arith.constant 0.000000e+00 : f32
      %151 = vector.broadcast %cst_40 : f32 to vector<1x2xf32>
      %152 = arith.maximumf %150, %151 : vector<1x2xf32>
      %153 = arith.minimumf %152, %116 : vector<1x2xf32>
      %c2 = arith.constant 2 : index
      %154 = arith.index_cast %arg11 : i32 to index
      %c0_41 = arith.constant 0 : index
      %155 = vector.load %arg9[%c2, %154, %c0_41] : memref<4x8x2xf32, #tpu.memory_space<vmem>>, vector<1x1x2xf32>
      %156 = vector.shape_cast %155 : vector<1x1x2xf32> to vector<1x2xf32>
      %157 = vector.shape_cast %153 : vector<1x2xf32> to vector<1x1x2xf32>
      tpu.vector_store %arg9[%c2, %154, %c0_41], %157 {strides = array<i32>} : memref<4x8x2xf32, #tpu.memory_space<vmem>>, vector<1x1x2xf32>,
      %158 = arith.subf %116, %153 : vector<1x2xf32>
      %159 = vector.extract_strided_slice %15 {offsets = [288, 0], sizes = [96, 2], strides = [1, 1]} : vector<384x2xf32> to vector<96x2xf32>
      %160 = vector.broadcast %158 : vector<1x2xf32> to vector<96x2xf32>
      %161 = arith.mulf %159, %160 : vector<96x2xf32>
      %162 = vector.extract_strided_slice %18 {offsets = [288, 0], sizes = [96, 2], strides = [1, 1]} : vector<384x2xf32> to vector<96x2xf32>
      %163 = arith.addf %161, %162 : vector<96x2xf32>
      %164 = vector.extract_strided_slice %29 {offsets = [288, 0], sizes = [96, 2], strides = [1, 1]} : vector<384x2xf32> to vector<96x2xf32>
      %165 = vector.extract_strided_slice %163 {offsets = [0, 0], sizes = [64, 2], strides = [1, 1]} : vector<96x2xf32> to vector<64x2xf32>
      %166 = vector.extract_strided_slice %164 {offsets = [0, 0], sizes = [64, 2], strides = [1, 1]} : vector<96x2xf32> to vector<64x2xf32>
      %167 = arith.addf %165, %166 : vector<64x2xf32>
      %168 = arith.negf %167 : vector<64x2xf32>
      %169 = math.exp %168 : vector<64x2xf32>
      %cst_42 = arith.constant 1.000000e+00 : f32
      %170 = vector.broadcast %cst_42 : f32 to vector<64x2xf32>
      %171 = arith.addf %170, %169 : vector<64x2xf32>
      %172 = arith.divf %170, %171 : vector<64x2xf32>
      %173 = vector.extract_strided_slice %172 {offsets = [0, 0], sizes = [32, 2], strides = [1, 1]} : vector<64x2xf32> to vector<32x2xf32>
      %174 = vector.extract_strided_slice %172 {offsets = [32, 0], sizes = [32, 2], strides = [1, 1]} : vector<64x2xf32> to vector<32x2xf32>
      %175 = vector.extract_strided_slice %163 {offsets = [64, 0], sizes = [32, 2], strides = [1, 1]} : vector<96x2xf32> to vector<32x2xf32>
      %176 = vector.extract_strided_slice %164 {offsets = [64, 0], sizes = [32, 2], strides = [1, 1]} : vector<96x2xf32> to vector<32x2xf32>
      %177 = arith.mulf %173, %176 : vector<32x2xf32>
      %178 = arith.addf %175, %177 : vector<32x2xf32>
      %179 = math.tanh %178 : vector<32x2xf32>
      %cst_43 = arith.constant 1.000000e+00 : f32
      %180 = vector.broadcast %cst_43 : f32 to vector<32x2xf32>
      %181 = arith.subf %180, %174 : vector<32x2xf32>
      %182 = arith.mulf %181, %179 : vector<32x2xf32>
      %183 = vector.extract_strided_slice %27 {offsets = [96, 0], sizes = [32, 2], strides = [1, 1]} : vector<128x2xf32> to vector<32x2xf32>
      %184 = arith.mulf %174, %183 : vector<32x2xf32>
      %185 = arith.addf %182, %184 : vector<32x2xf32>
      %c96 = arith.constant 96 : index
      %c0_44 = arith.constant 0 : index
      %186 = vector.load %arg10[%c96, %c0_44] : memref<128x2xf32, #tpu.memory_space<vmem>>, vector<32x2xf32>
      tpu.vector_store %arg10[%c96, %c0_44], %185 {strides = array<i32>} : memref<128x2xf32, #tpu.memory_space<vmem>>, vector<32x2xf32>,
      %187 = vector.extract_strided_slice %21 {offsets = [96, 0], sizes = [32, 2], strides = [1, 1]} : vector<128x2xf32> to vector<32x2xf32>
      %188 = arith.mulf %187, %185 : vector<32x2xf32>
      %cst_45 = arith.constant dense<0.000000e+00> : vector<2xf32>
      %189 = vector.multi_reduction <add>, %188, %cst_45 [0] : vector<32x2xf32> to vector<2xf32>
      %190 = vector.shape_cast %189 : vector<2xf32> to vector<1x2xf32>
      %191 = vector.extract_strided_slice %24 {offsets = [3, 0], sizes = [1, 2], strides = [1, 1]} : vector<4x2xf32> to vector<1x2xf32>
      %192 = arith.addf %190, %191 : vector<1x2xf32>
      %cst_46 = arith.constant 0.000000e+00 : f32
      %193 = vector.broadcast %cst_46 : f32 to vector<1x2xf32>
      %194 = arith.maximumf %192, %193 : vector<1x2xf32>
      %195 = arith.minimumf %194, %158 : vector<1x2xf32>
      %c3 = arith.constant 3 : index
      %196 = arith.index_cast %arg11 : i32 to index
      %c0_47 = arith.constant 0 : index
      %197 = vector.load %arg9[%c3, %196, %c0_47] : memref<4x8x2xf32, #tpu.memory_space<vmem>>, vector<1x1x2xf32>
      %198 = vector.shape_cast %197 : vector<1x1x2xf32> to vector<1x2xf32>
      %199 = vector.shape_cast %195 : vector<1x2xf32> to vector<1x1x2xf32>
      tpu.vector_store %arg9[%c3, %196, %c0_47], %199 {strides = array<i32>} : memref<4x8x2xf32, #tpu.memory_space<vmem>>, vector<1x1x2xf32>,
      %200 = arith.subf %158, %195 : vector<1x2xf32>
    }
    return
  }
  func.func @transform_0(%arg0: i32, %arg1: i32) -> (i32, i32, i32) {
    %c0_i32 = arith.constant 0 : i32
    %c0_i32_0 = arith.constant 0 : i32
    return %c0_i32, %arg1, %arg0 : i32, i32, i32
  }
  func.func @transform_1(%arg0: i32, %arg1: i32) -> (i32, i32) {
    %c0_i32 = arith.constant 0 : i32
    %c0_i32_0 = arith.constant 0 : i32
    %c0_i32_1 = arith.constant 0 : i32
    return %c0_i32, %c0_i32_0 : i32, i32
  }
  func.func @transform_2(%arg0: i32, %arg1: i32) -> (i32, i32) {
    %c0_i32 = arith.constant 0 : i32
    %c0_i32_0 = arith.constant 0 : i32
    %c0_i32_1 = arith.constant 0 : i32
    return %c0_i32, %c0_i32_0 : i32, i32
  }
  func.func @transform_3(%arg0: i32, %arg1: i32) -> (i32, i32) {
    %c0_i32 = arith.constant 0 : i32
    %c0_i32_0 = arith.constant 0 : i32
    %c0_i32_1 = arith.constant 0 : i32
    return %c0_i32, %c0_i32_0 : i32, i32
  }
  func.func @transform_4(%arg0: i32, %arg1: i32) -> (i32, i32) {
    %c0_i32 = arith.constant 0 : i32
    %c0_i32_0 = arith.constant 0 : i32
    %c0_i32_1 = arith.constant 0 : i32
    return %c0_i32, %c0_i32_0 : i32, i32
  }
  func.func @transform_5(%arg0: i32, %arg1: i32) -> (i32, i32) {
    %c0_i32 = arith.constant 0 : i32
    %c0_i32_0 = arith.constant 0 : i32
    %c0_i32_1 = arith.constant 0 : i32
    return %c0_i32, %c0_i32_0 : i32, i32
  }
  func.func @transform_6(%arg0: i32, %arg1: i32) -> (i32, i32) {
    %c0_i32 = arith.constant 0 : i32
    %c0_i32_0 = arith.constant 0 : i32
    %c0_i32_1 = arith.constant 0 : i32
    return %c0_i32, %c0_i32_0 : i32, i32
  }
  func.func @transform_7(%arg0: i32, %arg1: i32) -> (i32, i32, i32) {
    %c0_i32 = arith.constant 0 : i32
    %c0_i32_0 = arith.constant 0 : i32
    return %c0_i32, %arg1, %arg0 : i32, i32, i32
  }
}

</mosaic_0001>

<llo_original>
// kernel: _forward_impl.1
$region0: #{_forward_impl.1}
  #allocation0 [shape = 'u32[]', space=smem, size = 0x4, offset = 0x4, fixed_abs, tag = 'smem constant byte address 0x4 - core index']
  #allocation1 [shape = 'u32[144,128]{1,0:T(1,128)}', space=vmem, size = 0x12000, scoped, tag = 'internal scratch']
  #allocation2 [shape = 'f32[128,2]{1,0:T(8,128)}', space=vmem, size = 0x10000, scoped, tag = 'scratch operand']
  %s0 = inlined_call_operand.vmem [shape: f32[1,8,2], index: 0, kind: input, shape index: {}]
  %s1 = inlined_call_operand.vmem [shape: f32[384,128], index: 1, kind: input, shape index: {}]
  %s2 = inlined_call_operand.vmem [shape: f32[384,1], index: 2, kind: input, shape index: {}]
  %s3 = inlined_call_operand.vmem [shape: f32[384,1], index: 3, kind: input, shape index: {}]
  %s4 = inlined_call_operand.vmem [shape: f32[384,1], index: 4, kind: input, shape index: {}]
  %s5 = inlined_call_operand.vmem [shape: f32[128,1], index: 5, kind: input, shape index: {}]
  %s6 = inlined_call_operand.vmem [shape: f32[4,1], index: 6, kind: input, shape index: {}]
  %s7 = inlined_call_operand.vmem [shape: f32[4,8,2], index: 7, kind: output, shape index: {}]
  %s8 = sld [smem:[#allocation0]]
  $region53: #{_forward_impl.1} parent=0
    _
  %s10 = ssub.s32 1, %s8
  %s11 = scalar_select 0, %s10, %s8
  // Predicated region
  $region2: #{_forward_impl.1} parent=0 // pred_check
    _
  $region3: #{_forward_impl.1} parent=0 // pred_check_branch
    %13 = sbr.rel (0) target = $region5
  $region4: #{_forward_impl.1} parent=0 // pred_region
    _
  $region5: #{_forward_impl.1} parent=0 // pred_fallthru
    _
  // Predicated region
  $region6: #{_forward_impl.1} parent=0 // pred_check
    _
  $region7: #{_forward_impl.1} parent=0 // pred_check_branch
    %15 = sbr.rel (0) target = $region9
  $region8: #{_forward_impl.1} parent=0 // pred_region
    _
  $region9: #{_forward_impl.1} parent=0 // pred_fallthru
    _
  // Predicated region
  $region10: #{_forward_impl.1} parent=0 // pred_check
    _
  $region11: #{_forward_impl.1} parent=0 // pred_check_branch
    %17 = sbr.rel (0) target = $region13
  $region12: #{_forward_impl.1} parent=0 // pred_region
    _
  $region13: #{_forward_impl.1} parent=0 // pred_fallthru
    _
  // Predicated region
  $region14: #{_forward_impl.1} parent=0 // pred_check
    _
  $region15: #{_forward_impl.1} parent=0 // pred_check_branch
    %19 = sbr.rel (0) target = $region17
  $region16: #{_forward_impl.1} parent=0 // pred_region
    _
  $region17: #{_forward_impl.1} parent=0 // pred_fallthru
    _
  // Predicated region
  $region18: #{_forward_impl.1} parent=0 // pred_check
    _
  $region19: #{_forward_impl.1} parent=0 // pred_check_branch
    %21 = sbr.rel (0) target = $region21
  $region20: #{_forward_impl.1} parent=0 // pred_region
    _
  $region21: #{_forward_impl.1} parent=0 // pred_fallthru
    _
  // Predicated region
  $region22: #{_forward_impl.1} parent=0 // pred_check
    _
  $region23: #{_forward_impl.1} parent=0 // pred_check_branch
    %23 = sbr.rel (0) target = $region25
  $region24: #{_forward_impl.1} parent=0 // pred_region
    _
  $region25: #{_forward_impl.1} parent=0 // pred_fallthru
    _
  // Predicated region
  $region26: #{_forward_impl.1} parent=0 // pred_check
    _
  $region27: #{_forward_impl.1} parent=0 // pred_check_branch
    %25 = sbr.rel (0) target = $region29
  $region28: #{_forward_impl.1} parent=0 // pred_region
    _
  $region29: #{_forward_impl.1} parent=0 // pred_fallthru
    _
  %p26 = scmp.eq.s32.totalorder 0, 0
  // Predicated region
  $region30: #{_forward_impl.1} parent=0 // pred_check
    %p27 = pneg %p26
  $region31: #{_forward_impl.1} parent=0 // pred_check_branch
    %29 = sbr.rel (%p27) target = $region33
  $region32: #{_forward_impl.1} parent=0 // pred_region
    %vm30 = vcmask 15360
    %31 = vst.msk [vmem:[#allocation2] sm:$0xff] %vm30, 0.0
    %32 = vst.msk [vmem:[#allocation2 + $0x8] sm:$0xff] %vm30, 0.0
    %33 = vst.msk [vmem:[#allocation2 + $0x10] sm:$0xff] %vm30, 0.0
    %34 = vst.msk [vmem:[#allocation2 + $0x18] sm:$0xff] %vm30, 0.0
    %35 = vst.msk [vmem:[#allocation2 + $0x20] sm:$0xff] %vm30, 0.0
    %36 = vst.msk [vmem:[#allocation2 + $0x28] sm:$0xff] %vm30, 0.0
    %37 = vst.msk [vmem:[#allocation2 + $0x30] sm:$0xff] %vm30, 0.0
    %38 = vst.msk [vmem:[#allocation2 + $0x38] sm:$0xff] %vm30, 0.0
    %39 = vst.msk [vmem:[#allocation2 + $0x40] sm:$0xff] %vm30, 0.0
    %40 = vst.msk [vmem:[#allocation2 + $0x48] sm:$0xff] %vm30, 0.0
    %41 = vst.msk [vmem:[#allocation2 + $0x50] sm:$0xff] %vm30, 0.0
    %42 = vst.msk [vmem:[#allocation2 + $0x58] sm:$0xff] %vm30, 0.0
    %43 = vst.msk [vmem:[#allocation2 + $0x60] sm:$0xff] %vm30, 0.0
    %44 = vst.msk [vmem:[#allocation2 + $0x68] sm:$0xff] %vm30, 0.0
    %45 = vst.msk [vmem:[#allocation2 + $0x70] sm:$0xff] %vm30, 0.0
    %46 = vst.msk [vmem:[#allocation2 + $0x78] sm:$0xff] %vm30, 0.0
  $region33: #{_forward_impl.1} parent=0 // pred_fallthru
    _
  %s47 = smul.u32 0, 8
  %s48 = ssub.s32 8, %s47
  %p49 = scmp.lt.s32.totalorder %s48, 8
  %s50 = scalar_select %p49, %s48, 8
  %p51 = scmp.lt.s32.totalorder %s50, 8
  // Predicated region
  $region34: #{_forward_impl.1} parent=0 // pred_check
    %p52 = pneg %p51
  $region35: #{_forward_impl.1} parent=0 // pred_check_branch
    %54 = sbr.rel (%p52) target = $region37
  $region36: #{_forward_impl.1} parent=0 // pred_region
    %vm55 = vcmask 15360
    %56 = vst.msk [vmem:[%s7] sm:$0xff] %vm55, 0.0
    %57 = vst.msk [vmem:[%s7 + $0x8] sm:$0xff] %vm55, 0.0
    %58 = vst.msk [vmem:[%s7 + $0x10] sm:$0xff] %vm55, 0.0
    %59 = vst.msk [vmem:[%s7 + $0x18] sm:$0xff] %vm55, 0.0
  $region37: #{_forward_impl.1} parent=0 // pred_fallthru
    _
  %v60 = vld [vmem:[%s1] sm:$0xff]
  %v61 = vld [vmem:[%s1 + $0x8] sm:$0xff]
  %v62 = vld [vmem:[%s1 + $0x10] sm:$0xff]
  %v63 = vld [vmem:[%s1 + $0x18] sm:$0xff]
  %v64 = vld [vmem:[%s1 + $0x20] sm:$0xff]
  %v65 = vld [vmem:[%s1 + $0x28] sm:$0xff]
  %v66 = vld [vmem:[%s1 + $0x30] sm:$0xff]
  %v67 = vld [vmem:[%s1 + $0x38] sm:$0xff]
  %v68 = vld [vmem:[%s1 + $0x40] sm:$0xff]
  %v69 = vld [vmem:[%s1 + $0x48] sm:$0xff]
  %v70 = vld [vmem:[%s1 + $0x50] sm:$0xff]
  %v71 = vld [vmem:[%s1 + $0x58] sm:$0xff]
  %v72 = vld [vmem:[%s1 + $0x60] sm:$0xff]
  %v73 = vld [vmem:[%s1 + $0x68] sm:$0xff]
  %v74 = vld [vmem:[%s1 + $0x70] sm:$0xff]
  %v75 = vld [vmem:[%s1 + $0x78] sm:$0xff]
  %v76 = vld [vmem:[%s1 + $0x80] sm:$0xff]
  %v77 = vld [vmem:[%s1 + $0x88] sm:$0xff]
  %v78 = vld [vmem:[%s1 + $0x90] sm:$0xff]
  %v79 = vld [vmem:[%s1 + $0x98] sm:$0xff]
  %v80 = vld [vmem:[%s1 + $0xa0] sm:$0xff]
  %v81 = vld [vmem:[%s1 + $0xa8] sm:$0xff]
  %v82 = vld [vmem:[%s1 + $0xb0] sm:$0xff]
  %v83 = vld [vmem:[%s1 + $0xb8] sm:$0xff]
  %v84 = vld [vmem:[%s1 + $0xc0] sm:$0xff]
  %v85 = vld [vmem:[%s1 + $0xc8] sm:$0xff]
  %v86 = vld [vmem:[%s1 + $0xd0] sm:$0xff]
  %v87 = vld [vmem:[%s1 + $0xd8] sm:$0xff]
  %v88 = vld [vmem:[%s1 + $0xe0] sm:$0xff]
  %v89 = vld [vmem:[%s1 + $0xe8] sm:$0xff]
  %v90 = vld [vmem:[%s1 + $0xf0] sm:$0xff]
  %v91 = vld [vmem:[%s1 + $0xf8] sm:$0xff]
  %v92 = vld [vmem:[%s1 + $0x100] sm:$0xff]
  %v93 = vld [vmem:[%s1 + $0x108] sm:$0xff]
  %v94 = vld [vmem:[%s1 + $0x110] sm:$0xff]
  %v95 = vld [vmem:[%s1 + $0x118] sm:$0xff]
  %v96 = vld [vmem:[%s1 + $0x120] sm:$0xff]
  %v97 = vld [vmem:[%s1 + $0x128] sm:$0xff]
  %v98 = vld [vmem:[%s1 + $0x130] sm:$0xff]
  %v99 = vld [vmem:[%s1 + $0x138] sm:$0xff]
  %v100 = vld [vmem:[%s1 + $0x140] sm:$0xff]
  %v101 = vld [vmem:[%s1 + $0x148] sm:$0xff]
  %v102 = vld [vmem:[%s1 + $0x150] sm:$0xff]
  %v103 = vld [vmem:[%s1 + $0x158] sm:$0xff]
  %v104 = vld [vmem:[%s1 + $0x160] sm:$0xff]
  %v105 = vld [vmem:[%s1 + $0x168] sm:$0xff]
  %v106 = vld [vmem:[%s1 + $0x170] sm:$0xff]
  %v107 = vld [vmem:[%s1 + $0x178] sm:$0xff]
  %v108 = vld [vmem:[%s2] sm:$0xff]
  %v109 = vld [vmem:[%s2 + $0x8] sm:$0xff]
  %v110 = vld [vmem:[%s2 + $0x10] sm:$0xff]
  %v111 = vld [vmem:[%s2 + $0x18] sm:$0xff]
  %v112 = vld [vmem:[%s2 + $0x20] sm:$0xff]
  %v113 = vld [vmem:[%s2 + $0x28] sm:$0xff]
  %v114 = vld [vmem:[%s2 + $0x30] sm:$0xff]
  %v115 = vld [vmem:[%s2 + $0x38] sm:$0xff]
  %v116 = vld [vmem:[%s2 + $0x40] sm:$0xff]
  %v117 = vld [vmem:[%s2 + $0x48] sm:$0xff]
  %v118 = vld [vmem:[%s2 + $0x50] sm:$0xff]
  %v119 = vld [vmem:[%s2 + $0x58] sm:$0xff]
  %v120 = vld [vmem:[%s2 + $0x60] sm:$0xff]
  %v121 = vld [vmem:[%s2 + $0x68] sm:$0xff]
  %v122 = vld [vmem:[%s2 + $0x70] sm:$0xff]
  %v123 = vld [vmem:[%s2 + $0x78] sm:$0xff]
  %v124 = vld [vmem:[%s2 + $0x80] sm:$0xff]
  %v125 = vld [vmem:[%s2 + $0x88] sm:$0xff]
  %v126 = vld [vmem:[%s2 + $0x90] sm:$0xff]
  %v127 = vld [vmem:[%s2 + $0x98] sm:$0xff]
  %v128 = vld [vmem:[%s2 + $0xa0] sm:$0xff]
  %v129 = vld [vmem:[%s2 + $0xa8] sm:$0xff]
  %v130 = vld [vmem:[%s2 + $0xb0] sm:$0xff]
  %v131 = vld [vmem:[%s2 + $0xb8] sm:$0xff]
  %v132 = vld [vmem:[%s2 + $0xc0] sm:$0xff]
  %v133 = vld [vmem:[%s2 + $0xc8] sm:$0xff]
  %v134 = vld [vmem:[%s2 + $0xd0] sm:$0xff]
  %v135 = vld [vmem:[%s2 + $0xd8] sm:$0xff]
  %v136 = vld [vmem:[%s2 + $0xe0] sm:$0xff]
  %v137 = vld [vmem:[%s2 + $0xe8] sm:$0xff]
  %v138 = vld [vmem:[%s2 + $0xf0] sm:$0xff]
  %v139 = vld [vmem:[%s2 + $0xf8] sm:$0xff]
  %v140 = vld [vmem:[%s2 + $0x100] sm:$0xff]
  %v141 = vld [vmem:[%s2 + $0x108] sm:$0xff]
  %v142 = vld [vmem:[%s2 + $0x110] sm:$0xff]
  %v143 = vld [vmem:[%s2 + $0x118] sm:$0xff]
  %v144 = vld [vmem:[%s2 + $0x120] sm:$0xff]
  %v145 = vld [vmem:[%s2 + $0x128] sm:$0xff]
  %v146 = vld [vmem:[%s2 + $0x130] sm:$0xff]
  %v147 = vld [vmem:[%s2 + $0x138] sm:$0xff]
  %v148 = vld [vmem:[%s2 + $0x140] sm:$0xff]
  %v149 = vld [vmem:[%s2 + $0x148] sm:$0xff]
  %v150 = vld [vmem:[%s2 + $0x150] sm:$0xff]
  %v151 = vld [vmem:[%s2 + $0x158] sm:$0xff]
  %v152 = vld [vmem:[%s2 + $0x160] sm:$0xff]
  %v153 = vld [vmem:[%s2 + $0x168] sm:$0xff]
  %v154 = vld [vmem:[%s2 + $0x170] sm:$0xff]
  %v155 = vld [vmem:[%s2 + $0x178] sm:$0xff]
  %157 = vset.pattern.permute.xlu0 0
  %158 = vperm.xlu0 %157, %v108
  %v159 = vpop.permute.xlu0 %158
  %162 = vset.pattern.permute.xlu0 0
  %163 = vperm.xlu0 %162, %v109
  %v164 = vpop.permute.xlu0 %163
  %167 = vset.pattern.permute.xlu0 0
  %168 = vperm.xlu0 %167, %v110
  %v169 = vpop.permute.xlu0 %168
  %172 = vset.pattern.permute.xlu0 0
  %173 = vperm.xlu0 %172, %v111
  %v174 = vpop.permute.xlu0 %173
  %177 = vset.pattern.permute.xlu0 0
  %178 = vperm.xlu0 %177, %v112
  %v179 = vpop.permute.xlu0 %178
  %182 = vset.pattern.permute.xlu0 0
  %183 = vperm.xlu0 %182, %v113
  %v184 = vpop.permute.xlu0 %183
  %187 = vset.pattern.permute.xlu0 0
  %188 = vperm.xlu0 %187, %v114
  %v189 = vpop.permute.xlu0 %188
  %192 = vset.pattern.permute.xlu0 0
  %193 = vperm.xlu0 %192, %v115
  %v194 = vpop.permute.xlu0 %193
  %197 = vset.pattern.permute.xlu0 0
  %198 = vperm.xlu0 %197, %v116
  %v199 = vpop.permute.xlu0 %198
  %202 = vset.pattern.permute.xlu0 0
  %203 = vperm.xlu0 %202, %v117
  %v204 = vpop.permute.xlu0 %203
  %207 = vset.pattern.permute.xlu0 0
  %208 = vperm.xlu0 %207, %v118
  %v209 = vpop.permute.xlu0 %208
  %212 = vset.pattern.permute.xlu0 0
  %213 = vperm.xlu0 %212, %v119
  %v214 = vpop.permute.xlu0 %213
  %217 = vset.pattern.permute.xlu0 0
  %218 = vperm.xlu0 %217, %v120
  %v219 = vpop.permute.xlu0 %218
  %222 = vset.pattern.permute.xlu0 0
  %223 = vperm.xlu0 %222, %v121
  %v224 = vpop.permute.xlu0 %223
  %227 = vset.pattern.permute.xlu0 0
  %228 = vperm.xlu0 %227, %v122
  %v229 = vpop.permute.xlu0 %228
  %232 = vset.pattern.permute.xlu0 0
  %233 = vperm.xlu0 %232, %v123
  %v234 = vpop.permute.xlu0 %233
  %237 = vset.pattern.permute.xlu0 0
  %238 = vperm.xlu0 %237, %v124
  %v239 = vpop.permute.xlu0 %238
  %242 = vset.pattern.permute.xlu0 0
  %243 = vperm.xlu0 %242, %v125
  %v244 = vpop.permute.xlu0 %243
  %247 = vset.pattern.permute.xlu0 0
  %248 = vperm.xlu0 %247, %v126
  %v249 = vpop.permute.xlu0 %248
  %252 = vset.pattern.permute.xlu0 0
  %253 = vperm.xlu0 %252, %v127
  %v254 = vpop.permute.xlu0 %253
  %257 = vset.pattern.permute.xlu0 0
  %258 = vperm.xlu0 %257, %v128
  %v259 = vpop.permute.xlu0 %258
  %262 = vset.pattern.permute.xlu0 0
  %263 = vperm.xlu0 %262, %v129
  %v264 = vpop.permute.xlu0 %263
  %267 = vset.pattern.permute.xlu0 0
  %268 = vperm.xlu0 %267, %v130
  %v269 = vpop.permute.xlu0 %268
  %272 = vset.pattern.permute.xlu0 0
  %273 = vperm.xlu0 %272, %v131
  %v274 = vpop.permute.xlu0 %273
  %277 = vset.pattern.permute.xlu0 0
  %278 = vperm.xlu0 %277, %v132
  %v279 = vpop.permute.xlu0 %278
  %282 = vset.pattern.permute.xlu0 0
  %283 = vperm.xlu0 %282, %v133
  %v284 = vpop.permute.xlu0 %283
  %287 = vset.pattern.permute.xlu0 0
  %288 = vperm.xlu0 %287, %v134
  %v289 = vpop.permute.xlu0 %288
  %292 = vset.pattern.permute.xlu0 0
  %293 = vperm.xlu0 %292, %v135
  %v294 = vpop.permute.xlu0 %293
  %297 = vset.pattern.permute.xlu0 0
  %298 = vperm.xlu0 %297, %v136
  %v299 = vpop.permute.xlu0 %298
  %302 = vset.pattern.permute.xlu0 0
  %303 = vperm.xlu0 %302, %v137
  %v304 = vpop.permute.xlu0 %303
  %307 = vset.pattern.permute.xlu0 0
  %308 = vperm.xlu0 %307, %v138
  %v309 = vpop.permute.xlu0 %308
  %312 = vset.pattern.permute.xlu0 0
  %313 = vperm.xlu0 %312, %v139
  %v314 = vpop.permute.xlu0 %313
  %317 = vset.pattern.permute.xlu0 0
  %318 = vperm.xlu0 %317, %v140
  %v319 = vpop.permute.xlu0 %318
  %322 = vset.pattern.permute.xlu0 0
  %323 = vperm.xlu0 %322, %v141
  %v324 = vpop.permute.xlu0 %323
  %327 = vset.pattern.permute.xlu0 0
  %328 = vperm.xlu0 %327, %v142
  %v329 = vpop.permute.xlu0 %328
  %332 = vset.pattern.permute.xlu0 0
  %333 = vperm.xlu0 %332, %v143
  %v334 = vpop.permute.xlu0 %333
  %337 = vset.pattern.permute.xlu0 0
  %338 = vperm.xlu0 %337, %v144
  %v339 = vpop.permute.xlu0 %338
  %342 = vset.pattern.permute.xlu0 0
  %343 = vperm.xlu0 %342, %v145
  %v344 = vpop.permute.xlu0 %343
  %347 = vset.pattern.permute.xlu0 0
  %348 = vperm.xlu0 %347, %v146
  %v349 = vpop.permute.xlu0 %348
  %352 = vset.pattern.permute.xlu0 0
  %353 = vperm.xlu0 %352, %v147
  %v354 = vpop.permute.xlu0 %353
  %357 = vset.pattern.permute.xlu0 0
  %358 = vperm.xlu0 %357, %v148
  %v359 = vpop.permute.xlu0 %358
  %362 = vset.pattern.permute.xlu0 0
  %363 = vperm.xlu0 %362, %v149
  %v364 = vpop.permute.xlu0 %363
  %367 = vset.pattern.permute.xlu0 0
  %368 = vperm.xlu0 %367, %v150
  %v369 = vpop.permute.xlu0 %368
  %372 = vset.pattern.permute.xlu0 0
  %373 = vperm.xlu0 %372, %v151
  %v374 = vpop.permute.xlu0 %373
  %377 = vset.pattern.permute.xlu0 0
  %378 = vperm.xlu0 %377, %v152
  %v379 = vpop.permute.xlu0 %378
  %382 = vset.pattern.permute.xlu0 0
  %383 = vperm.xlu0 %382, %v153
  %v384 = vpop.permute.xlu0 %383
  %387 = vset.pattern.permute.xlu0 0
  %388 = vperm.xlu0 %387, %v154
  %v389 = vpop.permute.xlu0 %388
  %392 = vset.pattern.permute.xlu0 0
  %393 = vperm.xlu0 %392, %v155
  %v394 = vpop.permute.xlu0 %393
  %v396 = vld [vmem:[%s3] sm:$0xff]
  %v397 = vld [vmem:[%s3 + $0x8] sm:$0xff]
  %v398 = vld [vmem:[%s3 + $0x10] sm:$0xff]
  %v399 = vld [vmem:[%s3 + $0x18] sm:$0xff]
  %v400 = vld [vmem:[%s3 + $0x20] sm:$0xff]
  %v401 = vld [vmem:[%s3 + $0x28] sm:$0xff]
  %v402 = vld [vmem:[%s3 + $0x30] sm:$0xff]
  %v403 = vld [vmem:[%s3 + $0x38] sm:$0xff]
  %v404 = vld [vmem:[%s3 + $0x40] sm:$0xff]
  %v405 = vld [vmem:[%s3 + $0x48] sm:$0xff]
  %v406 = vld [vmem:[%s3 + $0x50] sm:$0xff]
  %v407 = vld [vmem:[%s3 + $0x58] sm:$0xff]
  %v408 = vld [vmem:[%s3 + $0x60] sm:$0xff]
  %v409 = vld [vmem:[%s3 + $0x68] sm:$0xff]
  %v410 = vld [vmem:[%s3 + $0x70] sm:$0xff]
  %v411 = vld [vmem:[%s3 + $0x78] sm:$0xff]
  %v412 = vld [vmem:[%s3 + $0x80] sm:$0xff]
  %v413 = vld [vmem:[%s3 + $0x88] sm:$0xff]
  %v414 = vld [vmem:[%s3 + $0x90] sm:$0xff]
  %v415 = vld [vmem:[%s3 + $0x98] sm:$0xff]
  %v416 = vld [vmem:[%s3 + $0xa0] sm:$0xff]
  %v417 = vld [vmem:[%s3 + $0xa8] sm:$0xff]
  %v418 = vld [vmem:[%s3 + $0xb0] sm:$0xff]
  %v419 = vld [vmem:[%s3 + $0xb8] sm:$0xff]
  %v420 = vld [vmem:[%s3 + $0xc0] sm:$0xff]
  %v421 = vld [vmem:[%s3 + $0xc8] sm:$0xff]
  %v422 = vld [vmem:[%s3 + $0xd0] sm:$0xff]
  %v423 = vld [vmem:[%s3 + $0xd8] sm:$0xff]
  %v424 = vld [vmem:[%s3 + $0xe0] sm:$0xff]
  %v425 = vld [vmem:[%s3 + $0xe8] sm:$0xff]
  %v426 = vld [vmem:[%s3 + $0xf0] sm:$0xff]
  %v427 = vld [vmem:[%s3 + $0xf8] sm:$0xff]
  %v428 = vld [vmem:[%s3 + $0x100] sm:$0xff]
  %v429 = vld [vmem:[%s3 + $0x108] sm:$0xff]
  %v430 = vld [vmem:[%s3 + $0x110] sm:$0xff]
  %v431 = vld [vmem:[%s3 + $0x118] sm:$0xff]
  %v432 = vld [vmem:[%s3 + $0x120] sm:$0xff]
  %v433 = vld [vmem:[%s3 + $0x128] sm:$0xff]
  %v434 = vld [vmem:[%s3 + $0x130] sm:$0xff]
  %v435 = vld [vmem:[%s3 + $0x138] sm:$0xff]
  %v436 = vld [vmem:[%s3 + $0x140] sm:$0xff]
  %v437 = vld [vmem:[%s3 + $0x148] sm:$0xff]
  %v438 = vld [vmem:[%s3 + $0x150] sm:$0xff]
  %v439 = vld [vmem:[%s3 + $0x158] sm:$0xff]
  %v440 = vld [vmem:[%s3 + $0x160] sm:$0xff]
  %v441 = vld [vmem:[%s3 + $0x168] sm:$0xff]
  %v442 = vld [vmem:[%s3 + $0x170] sm:$0xff]
  %v443 = vld [vmem:[%s3 + $0x178] sm:$0xff]
  %v444 = vld [vmem:[%s4] sm:$0xff]
  %v445 = vld [vmem:[%s4 + $0x8] sm:$0xff]
  %v446 = vld [vmem:[%s4 + $0x10] sm:$0xff]
  %v447 = vld [vmem:[%s4 + $0x18] sm:$0xff]
  %v448 = vld [vmem:[%s4 + $0x20] sm:$0xff]
  %v449 = vld [vmem:[%s4 + $0x28] sm:$0xff]
  %v450 = vld [vmem:[%s4 + $0x30] sm:$0xff]
  %v451 = vld [vmem:[%s4 + $0x38] sm:$0xff]
  %v452 = vld [vmem:[%s4 + $0x40] sm:$0xff]
  %v453 = vld [vmem:[%s4 + $0x48] sm:$0xff]
  %v454 = vld [vmem:[%s4 + $0x50] sm:$0xff]
  %v455 = vld [vmem:[%s4 + $0x58] sm:$0xff]
  %v456 = vld [vmem:[%s4 + $0x60] sm:$0xff]
  %v457 = vld [vmem:[%s4 + $0x68] sm:$0xff]
  %v458 = vld [vmem:[%s4 + $0x70] sm:$0xff]
  %v459 = vld [vmem:[%s4 + $0x78] sm:$0xff]
  %v460 = vld [vmem:[%s4 + $0x80] sm:$0xff]
  %v461 = vld [vmem:[%s4 + $0x88] sm:$0xff]
  %v462 = vld [vmem:[%s4 + $0x90] sm:$0xff]
  %v463 = vld [vmem:[%s4 + $0x98] sm:$0xff]
  %v464 = vld [vmem:[%s4 + $0xa0] sm:$0xff]
  %v465 = vld [vmem:[%s4 + $0xa8] sm:$0xff]
  %v466 = vld [vmem:[%s4 + $0xb0] sm:$0xff]
  %v467 = vld [vmem:[%s4 + $0xb8] sm:$0xff]
  %v468 = vld [vmem:[%s4 + $0xc0] sm:$0xff]
  %v469 = vld [vmem:[%s4 + $0xc8] sm:$0xff]
  %v470 = vld [vmem:[%s4 + $0xd0] sm:$0xff]
  %v471 = vld [vmem:[%s4 + $0xd8] sm:$0xff]
  %v472 = vld [vmem:[%s4 + $0xe0] sm:$0xff]
  %v473 = vld [vmem:[%s4 + $0xe8] sm:$0xff]
  %v474 = vld [vmem:[%s4 + $0xf0] sm:$0xff]
  %v475 = vld [vmem:[%s4 + $0xf8] sm:$0xff]
  %v476 = vld [vmem:[%s4 + $0x100] sm:$0xff]
  %v477 = vld [vmem:[%s4 + $0x108] sm:$0xff]
  %v478 = vld [vmem:[%s4 + $0x110] sm:$0xff]
  %v479 = vld [vmem:[%s4 + $0x118] sm:$0xff]
  %v480 = vld [vmem:[%s4 + $0x120] sm:$0xff]
  %v481 = vld [vmem:[%s4 + $0x128] sm:$0xff]
  %v482 = vld [vmem:[%s4 + $0x130] sm:$0xff]
  %v483 = vld [vmem:[%s4 + $0x138] sm:$0xff]
  %v484 = vld [vmem:[%s4 + $0x140] sm:$0xff]
  %v485 = vld [vmem:[%s4 + $0x148] sm:$0xff]
  %v486 = vld [vmem:[%s4 + $0x150] sm:$0xff]
  %v487 = vld [vmem:[%s4 + $0x158] sm:$0xff]
  %v488 = vld [vmem:[%s4 + $0x160] sm:$0xff]
  %v489 = vld [vmem:[%s4 + $0x168] sm:$0xff]
  %v490 = vld [vmem:[%s4 + $0x170] sm:$0xff]
  %v491 = vld [vmem:[%s4 + $0x178] sm:$0xff]
  %v492 = vld [vmem:[%s5] sm:$0xff]
  %v493 = vld [vmem:[%s5 + $0x8] sm:$0xff]
  %v494 = vld [vmem:[%s5 + $0x10] sm:$0xff]
  %v495 = vld [vmem:[%s5 + $0x18] sm:$0xff]
  %v496 = vld [vmem:[%s5 + $0x20] sm:$0xff]
  %v497 = vld [vmem:[%s5 + $0x28] sm:$0xff]
  %v498 = vld [vmem:[%s5 + $0x30] sm:$0xff]
  %v499 = vld [vmem:[%s5 + $0x38] sm:$0xff]
  %v500 = vld [vmem:[%s5 + $0x40] sm:$0xff]
  %v501 = vld [vmem:[%s5 + $0x48] sm:$0xff]
  %v502 = vld [vmem:[%s5 + $0x50] sm:$0xff]
  %v503 = vld [vmem:[%s5 + $0x58] sm:$0xff]
  %v504 = vld [vmem:[%s5 + $0x60] sm:$0xff]
  %v505 = vld [vmem:[%s5 + $0x68] sm:$0xff]
  %v506 = vld [vmem:[%s5 + $0x70] sm:$0xff]
  %v507 = vld [vmem:[%s5 + $0x78] sm:$0xff]
  %v508 = vld [vmem:[%s6] sm:$0xf]
  // While loop
  $region38: #{_forward_impl.1} parent=0 // loop_pre_header
    _
  $region39: #{_forward_impl.1} parent=0 // loop_header
    %s510 = sphi 0, %s512
    %p511 = scmp.ge.s32.totalorder %s510, %s50
  $region40: #{_forward_impl.1} parent=0 // loop_header_branch
    %514 = sbr.rel (%p511) target = $region44
  $region41: #{_forward_impl.1} parent=0 // loop_body
    %v515 = vld [vmem:[#allocation2] sm:$0xff]
    %v516 = vld [vmem:[#allocation2 + $0x8] sm:$0xff]
    %v517 = vld [vmem:[#allocation2 + $0x10] sm:$0xff]
    %v518 = vld [vmem:[#allocation2 + $0x18] sm:$0xff]
    %v519 = vld [vmem:[#allocation2 + $0x20] sm:$0xff]
    %v520 = vld [vmem:[#allocation2 + $0x28] sm:$0xff]
    %v521 = vld [vmem:[#allocation2 + $0x30] sm:$0xff]
    %v522 = vld [vmem:[#allocation2 + $0x38] sm:$0xff]
    %v523 = vld [vmem:[#allocation2 + $0x40] sm:$0xff]
    %v524 = vld [vmem:[#allocation2 + $0x48] sm:$0xff]
    %v525 = vld [vmem:[#allocation2 + $0x50] sm:$0xff]
    %v526 = vld [vmem:[#allocation2 + $0x58] sm:$0xff]
    %v527 = vld [vmem:[#allocation2 + $0x60] sm:$0xff]
    %v528 = vld [vmem:[#allocation2 + $0x68] sm:$0xff]
    %v529 = vld [vmem:[#allocation2 + $0x70] sm:$0xff]
    %v530 = vld [vmem:[#allocation2 + $0x78] sm:$0xff]
    %531 = vmatprep.subr.mxu0 0.0
    %532 = vmatpush1.msra.mxu0 %v530
    %533 = vmatprep.subr.mxu0 0.0
    %534 = vmatpush1.msra.mxu0 %v529
    %535 = vmatprep.subr.mxu0 0.0
    %536 = vmatpush1.msra.mxu0 %v528
    %537 = vmatprep.subr.mxu0 0.0
    %538 = vmatpush1.msra.mxu0 %v527
    %539 = vmatprep.subr.mxu0 0.0
    %540 = vmatpush1.msra.mxu0 %v526
    %541 = vmatprep.subr.mxu0 0.0
    %542 = vmatpush1.msra.mxu0 %v525
    %543 = vmatprep.subr.mxu0 0.0
    %544 = vmatpush1.msra.mxu0 %v524
    %545 = vmatprep.subr.mxu0 0.0
    %546 = vmatpush1.msra.mxu0 %v523
    %547 = vmatprep.subr.mxu0 0.0
    %548 = vmatpush1.msra.mxu0 %v522
    %549 = vmatprep.subr.mxu0 0.0
    %550 = vmatpush1.msra.mxu0 %v521
    %551 = vmatprep.subr.mxu0 0.0
    %552 = vmatpush1.msra.mxu0 %v520
    %553 = vmatprep.subr.mxu0 0.0
    %554 = vmatpush1.msra.mxu0 %v519
    %555 = vmatprep.subr.mxu0 0.0
    %556 = vmatpush1.msra.mxu0 %v518
    %557 = vmatprep.subr.mxu0 0.0
    %558 = vmatpush1.msra.mxu0 %v517
    %559 = vmatprep.subr.mxu0 0.0
    %560 = vmatpush1.msra.mxu0 %v516
    %561 = vmatprep.subr.mxu0 0.0
    %562 = vmatpush1.msra.mxu0 %v515
    %563 = vmatprep.subr.mxu0 0.0
    %564 = vmatpush2.msra.mxu0 0.0
    %565 = vmatprep.subr.mxu0 0.0
    %566 = vmatpush2.msra.mxu0 0.0
    %567 = vmatprep.subr.mxu0 0.0
    %568 = vmatpush2.msra.mxu0 0.0
    %569 = vmatprep.subr.mxu0 0.0
    %570 = vmatpush2.msra.mxu0 0.0
    %571 = vmatprep.subr.mxu0 0.0
    %572 = vmatpush2.msra.mxu0 0.0
    %573 = vmatprep.subr.mxu0 0.0
    %574 = vmatpush2.msra.mxu0 0.0
    %575 = vmatprep.subr.mxu0 0.0
    %576 = vmatpush2.msra.mxu0 0.0
    %577 = vmatprep.subr.mxu0 0.0
    %578 = vmatpush2.msra.mxu0 0.0
    %579 = vmatprep.subr.mxu0 0.0
    %580 = vmatpush2.msra.mxu0 0.0
    %581 = vmatprep.subr.mxu0 0.0
    %582 = vmatpush2.msra.mxu0 0.0
    %583 = vmatprep.subr.mxu0 0.0
    %584 = vmatpush2.msra.mxu0 0.0
    %585 = vmatprep.subr.mxu0 0.0
    %586 = vmatpush2.msra.mxu0 0.0
    %587 = vmatprep.subr.mxu0 0.0
    %588 = vmatpush2.msra.mxu0 0.0
    %589 = vmatprep.subr.mxu0 0.0
    %590 = vmatpush2.msra.mxu0 0.0
    %591 = vmatprep.subr.mxu0 0.0
    %592 = vmatpush2.msra.mxu0 0.0
    %593 = vmatprep.subr.mxu0 0.0
    %594 = vmatpush2.msra.mxu0 0.0
    %595 = vmatprep.mubr.f32.mxu0 0.0
    %596 = vmatmul.mubr.f32.gmra.mxu0 %v60
    %v597 = vpop.f32.mrf.mxu0
    %v598 = vadd.f32 %v159, %v597
    %v599 = vpop.f32.mrf.mxu0
    %600 = vmatprep.mubr.f32.mxu0 0.0
    %601 = vmatmul.mubr.f32.gmra.mxu0 %v61
    %v602 = vpop.f32.mrf.mxu0
    %v603 = vadd.f32 %v164, %v602
    %v604 = vpop.f32.mrf.mxu0
    %605 = vmatprep.mubr.f32.mxu0 0.0
    %606 = vmatmul.mubr.f32.gmra.mxu0 %v62
    %v607 = vpop.f32.mrf.mxu0
    %v608 = vadd.f32 %v169, %v607
    %v609 = vpop.f32.mrf.mxu0
    %610 = vmatprep.mubr.f32.mxu0 0.0
    %611 = vmatmul.mubr.f32.gmra.mxu0 %v63
    %v612 = vpop.f32.mrf.mxu0
    %v613 = vadd.f32 %v174, %v612
    %v614 = vpop.f32.mrf.mxu0
    %615 = vmatprep.mubr.f32.mxu0 0.0
    %616 = vmatmul.mubr.f32.gmra.mxu0 %v64
    %v617 = vpop.f32.mrf.mxu0
    %v618 = vadd.f32 %v179, %v617
    %v619 = vpop.f32.mrf.mxu0
    %620 = vmatprep.mubr.f32.mxu0 0.0
    %621 = vmatmul.mubr.f32.gmra.mxu0 %v65
    %v622 = vpop.f32.mrf.mxu0
    %v623 = vadd.f32 %v184, %v622
    %v624 = vpop.f32.mrf.mxu0
    %625 = vmatprep.mubr.f32.mxu0 0.0
    %626 = vmatmul.mubr.f32.gmra.mxu0 %v66
    %v627 = vpop.f32.mrf.mxu0
    %v628 = vadd.f32 %v189, %v627
    %v629 = vpop.f32.mrf.mxu0
    %630 = vmatprep.mubr.f32.mxu0 0.0
    %631 = vmatmul.mubr.f32.gmra.mxu0 %v67
    %v632 = vpop.f32.mrf.mxu0
    %v633 = vadd.f32 %v194, %v632
    %v634 = vpop.f32.mrf.mxu0
    %635 = vmatprep.mubr.f32.mxu0 0.0
    %636 = vmatmul.mubr.f32.gmra.mxu0 %v68
    %v637 = vpop.f32.mrf.mxu0
    %v638 = vadd.f32 %v199, %v637
    %v639 = vpop.f32.mrf.mxu0
    %640 = vmatprep.mubr.f32.mxu0 0.0
    %641 = vmatmul.mubr.f32.gmra.mxu0 %v69
    %v642 = vpop.f32.mrf.mxu0
    %v643 = vadd.f32 %v204, %v642
    %v644 = vpop.f32.mrf.mxu0
    %645 = vmatprep.mubr.f32.mxu0 0.0
    %646 = vmatmul.mubr.f32.gmra.mxu0 %v70
    %v647 = vpop.f32.mrf.mxu0
    %v648 = vadd.f32 %v209, %v647
    %v649 = vpop.f32.mrf.mxu0
    %650 = vmatprep.mubr.f32.mxu0 0.0
    %651 = vmatmul.mubr.f32.gmra.mxu0 %v71
    %v652 = vpop.f32.mrf.mxu0
    %v653 = vadd.f32 %v214, %v652
    %v654 = vpop.f32.mrf.mxu0
    %655 = vmatprep.mubr.f32.mxu0 0.0
    %656 = vmatmul.mubr.f32.gmra.mxu0 %v72
    %v657 = vpop.f32.mrf.mxu0
    %v658 = vadd.f32 %v219, %v657
    %v659 = vpop.f32.mrf.mxu0
    %660 = vmatprep.mubr.f32.mxu0 0.0
    %661 = vmatmul.mubr.f32.gmra.mxu0 %v73
    %v662 = vpop.f32.mrf.mxu0
    %v663 = vadd.f32 %v224, %v662
    %v664 = vpop.f32.mrf.mxu0
    %665 = vmatprep.mubr.f32.mxu0 0.0
    %666 = vmatmul.mubr.f32.gmra.mxu0 %v74
    %v667 = vpop.f32.mrf.mxu0
    %v668 = vadd.f32 %v229, %v667
    %v669 = vpop.f32.mrf.mxu0
    %670 = vmatprep.mubr.f32.mxu0 0.0
    %671 = vmatmul.mubr.f32.gmra.mxu0 %v75
    %v672 = vpop.f32.mrf.mxu0
    %v673 = vadd.f32 %v234, %v672
    %v674 = vpop.f32.mrf.mxu0
    %675 = vmatprep.mubr.f32.mxu0 0.0
    %676 = vmatmul.mubr.f32.gmra.mxu0 %v76
    %v677 = vpop.f32.mrf.mxu0
    %v678 = vadd.f32 %v239, %v677
    %v679 = vpop.f32.mrf.mxu0
    %680 = vmatprep.mubr.f32.mxu0 0.0
    %681 = vmatmul.mubr.f32.gmra.mxu0 %v77
    %v682 = vpop.f32.mrf.mxu0
    %v683 = vadd.f32 %v244, %v682
    %v684 = vpop.f32.mrf.mxu0
    %685 = vmatprep.mubr.f32.mxu0 0.0
    %686 = vmatmul.mubr.f32.gmra.mxu0 %v78
    %v687 = vpop.f32.mrf.mxu0
    %v688 = vadd.f32 %v249, %v687
    %v689 = vpop.f32.mrf.mxu0
    %690 = vmatprep.mubr.f32.mxu0 0.0
    %691 = vmatmul.mubr.f32.gmra.mxu0 %v79
    %v692 = vpop.f32.mrf.mxu0
    %v693 = vadd.f32 %v254, %v692
    %v694 = vpop.f32.mrf.mxu0
    %695 = vmatprep.mubr.f32.mxu0 0.0
    %696 = vmatmul.mubr.f32.gmra.mxu0 %v80
    %v697 = vpop.f32.mrf.mxu0
    %v698 = vadd.f32 %v259, %v697
    %v699 = vpop.f32.mrf.mxu0
    %700 = vmatprep.mubr.f32.mxu0 0.0
    %701 = vmatmul.mubr.f32.gmra.mxu0 %v81
    %v702 = vpop.f32.mrf.mxu0
    %v703 = vadd.f32 %v264, %v702
    %v704 = vpop.f32.mrf.mxu0
    %705 = vmatprep.mubr.f32.mxu0 0.0
    %706 = vmatmul.mubr.f32.gmra.mxu0 %v82
    %v707 = vpop.f32.mrf.mxu0
    %v708 = vadd.f32 %v269, %v707
    %v709 = vpop.f32.mrf.mxu0
    %710 = vmatprep.mubr.f32.mxu0 0.0
    %711 = vmatmul.mubr.f32.gmra.mxu0 %v83
    %v712 = vpop.f32.mrf.mxu0
    %v713 = vadd.f32 %v274, %v712
    %v714 = vpop.f32.mrf.mxu0
    %715 = vmatprep.mubr.f32.mxu0 0.0
    %716 = vmatmul.mubr.f32.gmra.mxu0 %v84
    %v717 = vpop.f32.mrf.mxu0
    %v718 = vadd.f32 %v279, %v717
    %v719 = vpop.f32.mrf.mxu0
    %720 = vmatprep.mubr.f32.mxu0 0.0
    %721 = vmatmul.mubr.f32.gmra.mxu0 %v85
    %v722 = vpop.f32.mrf.mxu0
    %v723 = vadd.f32 %v284, %v722
    %v724 = vpop.f32.mrf.mxu0
    %725 = vmatprep.mubr.f32.mxu0 0.0
    %726 = vmatmul.mubr.f32.gmra.mxu0 %v86
    %v727 = vpop.f32.mrf.mxu0
    %v728 = vadd.f32 %v289, %v727
    %v729 = vpop.f32.mrf.mxu0
    %730 = vmatprep.mubr.f32.mxu0 0.0
    %731 = vmatmul.mubr.f32.gmra.mxu0 %v87
    %v732 = vpop.f32.mrf.mxu0
    %v733 = vadd.f32 %v294, %v732
    %v734 = vpop.f32.mrf.mxu0
    %735 = vmatprep.mubr.f32.mxu0 0.0
    %736 = vmatmul.mubr.f32.gmra.mxu0 %v88
    %v737 = vpop.f32.mrf.mxu0
    %v738 = vadd.f32 %v299, %v737
    %v739 = vpop.f32.mrf.mxu0
    %740 = vmatprep.mubr.f32.mxu0 0.0
    %741 = vmatmul.mubr.f32.gmra.mxu0 %v89
    %v742 = vpop.f32.mrf.mxu0
    %v743 = vadd.f32 %v304, %v742
    %v744 = vpop.f32.mrf.mxu0
    %745 = vmatprep.mubr.f32.mxu0 0.0
    %746 = vmatmul.mubr.f32.gmra.mxu0 %v90
    %v747 = vpop.f32.mrf.mxu0
    %v748 = vadd.f32 %v309, %v747
    %v749 = vpop.f32.mrf.mxu0
    %750 = vmatprep.mubr.f32.mxu0 0.0
    %751 = vmatmul.mubr.f32.gmra.mxu0 %v91
    %v752 = vpop.f32.mrf.mxu0
    %v753 = vadd.f32 %v314, %v752
    %v754 = vpop.f32.mrf.mxu0
    %755 = vmatprep.mubr.f32.mxu0 0.0
    %756 = vmatmul.mubr.f32.gmra.mxu0 %v92
    %v757 = vpop.f32.mrf.mxu0
    %v758 = vadd.f32 %v319, %v757
    %v759 = vpop.f32.mrf.mxu0
    %760 = vmatprep.mubr.f32.mxu0 0.0
    %761 = vmatmul.mubr.f32.gmra.mxu0 %v93
    %v762 = vpop.f32.mrf.mxu0
    %v763 = vadd.f32 %v324, %v762
    %v764 = vpop.f32.mrf.mxu0
    %765 = vmatprep.mubr.f32.mxu0 0.0
    %766 = vmatmul.mubr.f32.gmra.mxu0 %v94
    %v767 = vpop.f32.mrf.mxu0
    %v768 = vadd.f32 %v329, %v767
    %v769 = vpop.f32.mrf.mxu0
    %770 = vmatprep.mubr.f32.mxu0 0.0
    %771 = vmatmul.mubr.f32.gmra.mxu0 %v95
    %v772 = vpop.f32.mrf.mxu0
    %v773 = vadd.f32 %v334, %v772
    %v774 = vpop.f32.mrf.mxu0
    %775 = vmatprep.mubr.f32.mxu0 0.0
    %776 = vmatmul.mubr.f32.gmra.mxu0 %v96
    %v777 = vpop.f32.mrf.mxu0
    %v778 = vadd.f32 %v339, %v777
    %v779 = vpop.f32.mrf.mxu0
    %780 = vmatprep.mubr.f32.mxu0 0.0
    %781 = vmatmul.mubr.f32.gmra.mxu0 %v97
    %v782 = vpop.f32.mrf.mxu0
    %v783 = vadd.f32 %v344, %v782
    %v784 = vpop.f32.mrf.mxu0
    %785 = vmatprep.mubr.f32.mxu0 0.0
    %786 = vmatmul.mubr.f32.gmra.mxu0 %v98
    %v787 = vpop.f32.mrf.mxu0
    %v788 = vadd.f32 %v349, %v787
    %v789 = vpop.f32.mrf.mxu0
    %790 = vmatprep.mubr.f32.mxu0 0.0
    %791 = vmatmul.mubr.f32.gmra.mxu0 %v99
    %v792 = vpop.f32.mrf.mxu0
    %v793 = vadd.f32 %v354, %v792
    %v794 = vpop.f32.mrf.mxu0
    %795 = vmatprep.mubr.f32.mxu0 0.0
    %796 = vmatmul.mubr.f32.gmra.mxu0 %v100
    %v797 = vpop.f32.mrf.mxu0
    %v798 = vadd.f32 %v359, %v797
    %v799 = vpop.f32.mrf.mxu0
    %800 = vmatprep.mubr.f32.mxu0 0.0
    %801 = vmatmul.mubr.f32.gmra.mxu0 %v101
    %v802 = vpop.f32.mrf.mxu0
    %v803 = vadd.f32 %v364, %v802
    %v804 = vpop.f32.mrf.mxu0
    %805 = vmatprep.mubr.f32.mxu0 0.0
    %806 = vmatmul.mubr.f32.gmra.mxu0 %v102
    %v807 = vpop.f32.mrf.mxu0
    %v808 = vadd.f32 %v369, %v807
    %v809 = vpop.f32.mrf.mxu0
    %810 = vmatprep.mubr.f32.mxu0 0.0
    %811 = vmatmul.mubr.f32.gmra.mxu0 %v103
    %v812 = vpop.f32.mrf.mxu0
    %v813 = vadd.f32 %v374, %v812
    %v814 = vpop.f32.mrf.mxu0
    %815 = vmatprep.mubr.f32.mxu0 0.0
    %816 = vmatmul.mubr.f32.gmra.mxu0 %v104
    %v817 = vpop.f32.mrf.mxu0
    %v818 = vadd.f32 %v379, %v817
    %v819 = vpop.f32.mrf.mxu0
    %820 = vmatprep.mubr.f32.mxu0 0.0
    %821 = vmatmul.mubr.f32.gmra.mxu0 %v105
    %v822 = vpop.f32.mrf.mxu0
    %v823 = vadd.f32 %v384, %v822
    %v824 = vpop.f32.mrf.mxu0
    %825 = vmatprep.mubr.f32.mxu0 0.0
    %826 = vmatmul.mubr.f32.gmra.mxu0 %v106
    %v827 = vpop.f32.mrf.mxu0
    %v828 = vadd.f32 %v389, %v827
    %v829 = vpop.f32.mrf.mxu0
    %830 = vmatprep.mubr.f32.mxu0 0.0
    %831 = vmatmul.mubr.f32.gmra.mxu0 %v107
    %v832 = vpop.f32.mrf.mxu0
    %v833 = vadd.f32 %v394, %v832
    %v834 = vpop.f32.mrf.mxu0
    %835 = vdwg.mxu0
    %s836 = scalar_lea.vmem %s0, %s510
    %v837 = vld [vmem:[%s836] sm:$0x1]
    %839 = vset.pattern.permute.xlu0 0
    %840 = vperm.xlu0 %839, %v396
    %v841 = vpop.permute.xlu0 %840
    %844 = vset.pattern.permute.xlu0 0
    %845 = vperm.xlu0 %844, %v397
    %v846 = vpop.permute.xlu0 %845
    %849 = vset.pattern.permute.xlu0 0
    %850 = vperm.xlu0 %849, %v398
    %v851 = vpop.permute.xlu0 %850
    %854 = vset.pattern.permute.xlu0 0
    %855 = vperm.xlu0 %854, %v399
    %v856 = vpop.permute.xlu0 %855
    %859 = vset.pattern.permute.xlu0 0
    %860 = vperm.xlu0 %859, %v400
    %v861 = vpop.permute.xlu0 %860
    %864 = vset.pattern.permute.xlu0 0
    %865 = vperm.xlu0 %864, %v401
    %v866 = vpop.permute.xlu0 %865
    %869 = vset.pattern.permute.xlu0 0
    %870 = vperm.xlu0 %869, %v402
    %v871 = vpop.permute.xlu0 %870
    %874 = vset.pattern.permute.xlu0 0
    %875 = vperm.xlu0 %874, %v403
    %v876 = vpop.permute.xlu0 %875
    %879 = vset.pattern.permute.xlu0 0
    %880 = vperm.xlu0 %879, %v404
    %v881 = vpop.permute.xlu0 %880
    %884 = vset.pattern.permute.xlu0 0
    %885 = vperm.xlu0 %884, %v405
    %v886 = vpop.permute.xlu0 %885
    %889 = vset.pattern.permute.xlu0 0
    %890 = vperm.xlu0 %889, %v406
    %v891 = vpop.permute.xlu0 %890
    %894 = vset.pattern.permute.xlu0 0
    %895 = vperm.xlu0 %894, %v407
    %v896 = vpop.permute.xlu0 %895
    %v898 = vlaneseq
    %v899 = vshrl.u32 %v898, 7
    %v900 = vsub.s32 0, %v899
    %v901 = vrot.slane %v837, %v900
    %v902 = vmul.f32 %v841, %v901
    %v903 = vmul.f32 %v846, %v901
    %v904 = vmul.f32 %v851, %v901
    %v905 = vmul.f32 %v856, %v901
    %v906 = vmul.f32 %v861, %v901
    %v907 = vmul.f32 %v866, %v901
    %v908 = vmul.f32 %v871, %v901
    %v909 = vmul.f32 %v876, %v901
    %v910 = vmul.f32 %v881, %v901
    %v911 = vmul.f32 %v886, %v901
    %v912 = vmul.f32 %v891, %v901
    %v913 = vmul.f32 %v896, %v901
    %915 = vset.pattern.permute.xlu0 0
    %916 = vperm.xlu0 %915, %v444
    %v917 = vpop.permute.xlu0 %916
    %920 = vset.pattern.permute.xlu0 0
    %921 = vperm.xlu0 %920, %v445
    %v922 = vpop.permute.xlu0 %921
    %925 = vset.pattern.permute.xlu0 0
    %926 = vperm.xlu0 %925, %v446
    %v927 = vpop.permute.xlu0 %926
    %930 = vset.pattern.permute.xlu0 0
    %931 = vperm.xlu0 %930, %v447
    %v932 = vpop.permute.xlu0 %931
    %935 = vset.pattern.permute.xlu0 0
    %936 = vperm.xlu0 %935, %v448
    %v937 = vpop.permute.xlu0 %936
    %940 = vset.pattern.permute.xlu0 0
    %941 = vperm.xlu0 %940, %v449
    %v942 = vpop.permute.xlu0 %941
    %945 = vset.pattern.permute.xlu0 0
    %946 = vperm.xlu0 %945, %v450
    %v947 = vpop.permute.xlu0 %946
    %950 = vset.pattern.permute.xlu0 0
    %951 = vperm.xlu0 %950, %v451
    %v952 = vpop.permute.xlu0 %951
    %955 = vset.pattern.permute.xlu0 0
    %956 = vperm.xlu0 %955, %v452
    %v957 = vpop.permute.xlu0 %956
    %960 = vset.pattern.permute.xlu0 0
    %961 = vperm.xlu0 %960, %v453
    %v962 = vpop.permute.xlu0 %961
    %965 = vset.pattern.permute.xlu0 0
    %966 = vperm.xlu0 %965, %v454
    %v967 = vpop.permute.xlu0 %966
    %970 = vset.pattern.permute.xlu0 0
    %971 = vperm.xlu0 %970, %v455
    %v972 = vpop.permute.xlu0 %971
    %v974 = vadd.f32 %v902, %v917
    %v975 = vadd.f32 %v903, %v922
    %v976 = vadd.f32 %v904, %v927
    %v977 = vadd.f32 %v905, %v932
    %v978 = vadd.f32 %v906, %v937
    %v979 = vadd.f32 %v907, %v942
    %v980 = vadd.f32 %v908, %v947
    %v981 = vadd.f32 %v909, %v952
    %v982 = vadd.f32 %v910, %v957
    %v983 = vadd.f32 %v911, %v962
    %v984 = vadd.f32 %v912, %v967
    %v985 = vadd.f32 %v913, %v972
    %v986 = vadd.f32 %v974, %v598
    %v987 = vadd.f32 %v975, %v603
    %v988 = vadd.f32 %v976, %v608
    %v989 = vadd.f32 %v977, %v613
    %v990 = vadd.f32 %v978, %v618
    %v991 = vadd.f32 %v979, %v623
    %v992 = vadd.f32 %v980, %v628
    %v993 = vadd.f32 %v981, %v633
    %v994 = vxor.u32 %v986, 2147483648
    %v995 = vxor.u32 %v987, 2147483648
    %v996 = vxor.u32 %v988, 2147483648
    %v997 = vxor.u32 %v989, 2147483648
    %v998 = vxor.u32 %v990, 2147483648
    %v999 = vxor.u32 %v991, 2147483648
    %v1000 = vxor.u32 %v992, 2147483648
    %v1001 = vxor.u32 %v993, 2147483648
    %v1002 = vmul.f32 %v994, 1.442695
    %v1003 = vpow.pop %v1002
    %v1004 = vmul.f32 %v995, 1.442695
    %v1005 = vpow.pop %v1004
    %v1006 = vmul.f32 %v996, 1.442695
    %v1007 = vpow.pop %v1006
    %v1008 = vmul.f32 %v997, 1.442695
    %v1009 = vpow.pop %v1008
    %v1010 = vmul.f32 %v998, 1.442695
    %v1011 = vpow.pop %v1010
    %v1012 = vmul.f32 %v999, 1.442695
    %v1013 = vpow.pop %v1012
    %v1014 = vmul.f32 %v1000, 1.442695
    %v1015 = vpow.pop %v1014
    %v1016 = vmul.f32 %v1001, 1.442695
    %v1017 = vpow.pop %v1016
    %v1018 = vadd.f32 %v1003, 1.0
    %v1019 = vadd.f32 %v1005, 1.0
    %v1020 = vadd.f32 %v1007, 1.0
    %v1021 = vadd.f32 %v1009, 1.0
    %v1022 = vadd.f32 %v1011, 1.0
    %v1023 = vadd.f32 %v1013, 1.0
    %v1024 = vadd.f32 %v1015, 1.0
    %v1025 = vadd.f32 %v1017, 1.0
    %v1026 = vrcp.pop %v1018
    %v1027 = vmul.f32 1.0, %v1026
    %v1028 = vrcp.pop %v1019
    %v1029 = vmul.f32 1.0, %v1028
    %v1030 = vrcp.pop %v1020
    %v1031 = vmul.f32 1.0, %v1030
    %v1032 = vrcp.pop %v1021
    %v1033 = vmul.f32 1.0, %v1032
    %v1034 = vrcp.pop %v1022
    %v1035 = vmul.f32 1.0, %v1034
    %v1036 = vrcp.pop %v1023
    %v1037 = vmul.f32 1.0, %v1036
    %v1038 = vrcp.pop %v1024
    %v1039 = vmul.f32 1.0, %v1038
    %v1040 = vrcp.pop %v1025
    %v1041 = vmul.f32 1.0, %v1040
    %v1042 = vmul.f32 %v1027, %v638
    %v1043 = vmul.f32 %v1029, %v643
    %v1044 = vmul.f32 %v1031, %v648
    %v1045 = vmul.f32 %v1033, %v653
    %v1046 = vadd.f32 %v982, %v1042
    %v1047 = vadd.f32 %v983, %v1043
    %v1048 = vadd.f32 %v984, %v1044
    %v1049 = vadd.f32 %v985, %v1045
    %v1050 = vtanh.pop %v1046
    %v1051 = vtanh.pop %v1047
    %v1052 = vtanh.pop %v1048
    %v1053 = vtanh.pop %v1049
    %v1054 = vsub.f32 1.0, %v1035
    %v1055 = vsub.f32 1.0, %v1037
    %v1056 = vsub.f32 1.0, %v1039
    %v1057 = vsub.f32 1.0, %v1041
    %v1058 = vmul.f32 %v1054, %v1050
    %v1059 = vmul.f32 %v1055, %v1051
    %v1060 = vmul.f32 %v1056, %v1052
    %v1061 = vmul.f32 %v1057, %v1053
    %v1062 = vmul.f32 %v1035, %v515
    %v1063 = vmul.f32 %v1037, %v516
    %v1064 = vmul.f32 %v1039, %v517
    %v1065 = vmul.f32 %v1041, %v518
    %v1066 = vadd.f32 %v1058, %v1062
    %v1067 = vadd.f32 %v1059, %v1063
    %v1068 = vadd.f32 %v1060, %v1064
    %v1069 = vadd.f32 %v1061, %v1065
    %vm1070 = vcmask 15360
    %1071 = vst.msk [vmem:[#allocation2] sm:$0xff] %vm1070, %v1066
    %1072 = vst.msk [vmem:[#allocation2 + $0x8] sm:$0xff] %vm1070, %v1067
    %1073 = vst.msk [vmem:[#allocation2 + $0x10] sm:$0xff] %vm1070, %v1068
    %1074 = vst.msk [vmem:[#allocation2 + $0x18] sm:$0xff] %vm1070, %v1069
    %1076 = vset.pattern.permute.xlu0 0
    %1077 = vperm.xlu0 %1076, %v492
    %v1078 = vpop.permute.xlu0 %1077
    %1081 = vset.pattern.permute.xlu0 0
    %1082 = vperm.xlu0 %1081, %v493
    %v1083 = vpop.permute.xlu0 %1082
    %1086 = vset.pattern.permute.xlu0 0
    %1087 = vperm.xlu0 %1086, %v494
    %v1088 = vpop.permute.xlu0 %1087
    %1091 = vset.pattern.permute.xlu0 0
    %1092 = vperm.xlu0 %1091, %v495
    %v1093 = vpop.permute.xlu0 %1092
    %v1095 = vmul.f32 %v1078, %v1066
    %v1096 = vmul.f32 %v1083, %v1067
    %v1097 = vmul.f32 %v1088, %v1068
    %v1098 = vmul.f32 %v1093, %v1069
    %v1099 = vsel %vm1070, %v1095, 0.0
    %v1100 = vsel %vm1070, %v1096, 0.0
    %v1101 = vadd.f32 %v1099, %v1100
    %v1102 = vsel %vm1070, %v1097, 0.0
    %v1103 = vadd.f32 %v1101, %v1102
    %v1104 = vsel %vm1070, %v1098, 0.0
    %v1105 = vadd.f32 %v1103, %v1104
    %v1106 = vrot.slane %v1105, 4
    %v1107 = vadd.f32 %v1105, %v1106
    %v1108 = vrot.slane %v1107, 2
    %v1109 = vadd.f32 %v1107, %v1108
    %v1110 = vrot.slane %v1109, 1
    %v1111 = vadd.f32 %v1109, %v1110
    %1113 = vset.pattern.permute.xlu0 0
    %1114 = vperm.xlu0 %1113, %v508
    %v1115 = vpop.permute.xlu0 %1114
    %v1117 = vadd.f32 %v1111, %v1115
    %v1118 = vmax.f32 %v1117, 0.0
    %v1119 = vmin.f32 %v1118, %v837
    %s1120 = scalar_lea.vmem %s7, %s510
    %vm1121 = vcmask 8192
    %1122 = vst.msk [vmem:[%s1120] sm:$0x1] %vm1121, %v1119
    %v1123 = vsub.f32 %v837, %v1119
    %1125 = vset.pattern.permute.xlu0 0
    %1126 = vperm.xlu0 %1125, %v408
    %v1127 = vpop.permute.xlu0 %1126
    %1130 = vset.pattern.permute.xlu0 0
    %1131 = vperm.xlu0 %1130, %v409
    %v1132 = vpop.permute.xlu0 %1131
    %1135 = vset.pattern.permute.xlu0 0
    %1136 = vperm.xlu0 %1135, %v410
    %v1137 = vpop.permute.xlu0 %1136
    %1140 = vset.pattern.permute.xlu0 0
    %1141 = vperm.xlu0 %1140, %v411
    %v1142 = vpop.permute.xlu0 %1141
    %1145 = vset.pattern.permute.xlu0 0
    %1146 = vperm.xlu0 %1145, %v412
    %v1147 = vpop.permute.xlu0 %1146
    %1150 = vset.pattern.permute.xlu0 0
    %1151 = vperm.xlu0 %1150, %v413
    %v1152 = vpop.permute.xlu0 %1151
    %1155 = vset.pattern.permute.xlu0 0
    %1156 = vperm.xlu0 %1155, %v414
    %v1157 = vpop.permute.xlu0 %1156
    %1160 = vset.pattern.permute.xlu0 0
    %1161 = vperm.xlu0 %1160, %v415
    %v1162 = vpop.permute.xlu0 %1161
    %1165 = vset.pattern.permute.xlu0 0
    %1166 = vperm.xlu0 %1165, %v416
    %v1167 = vpop.permute.xlu0 %1166
    %1170 = vset.pattern.permute.xlu0 0
    %1171 = vperm.xlu0 %1170, %v417
    %v1172 = vpop.permute.xlu0 %1171
    %1175 = vset.pattern.permute.xlu0 0
    %1176 = vperm.xlu0 %1175, %v418
    %v1177 = vpop.permute.xlu0 %1176
    %1180 = vset.pattern.permute.xlu0 0
    %1181 = vperm.xlu0 %1180, %v419
    %v1182 = vpop.permute.xlu0 %1181
    %v1184 = vlaneseq
    %v1185 = vshrl.u32 %v1184, 7
    %v1186 = vsub.s32 0, %v1185
    %v1187 = vrot.slane %v1123, %v1186
    %v1188 = vmul.f32 %v1127, %v1187
    %v1189 = vmul.f32 %v1132, %v1187
    %v1190 = vmul.f32 %v1137, %v1187
    %v1191 = vmul.f32 %v1142, %v1187
    %v1192 = vmul.f32 %v1147, %v1187
    %v1193 = vmul.f32 %v1152, %v1187
    %v1194 = vmul.f32 %v1157, %v1187
    %v1195 = vmul.f32 %v1162, %v1187
    %v1196 = vmul.f32 %v1167, %v1187
    %v1197 = vmul.f32 %v1172, %v1187
    %v1198 = vmul.f32 %v1177, %v1187
    %v1199 = vmul.f32 %v1182, %v1187
    %1201 = vset.pattern.permute.xlu0 0
    %1202 = vperm.xlu0 %1201, %v456
    %v1203 = vpop.permute.xlu0 %1202
    %1206 = vset.pattern.permute.xlu0 0
    %1207 = vperm.xlu0 %1206, %v457
    %v1208 = vpop.permute.xlu0 %1207
    %1211 = vset.pattern.permute.xlu0 0
    %1212 = vperm.xlu0 %1211, %v458
    %v1213 = vpop.permute.xlu0 %1212
    %1216 = vset.pattern.permute.xlu0 0
    %1217 = vperm.xlu0 %1216, %v459
    %v1218 = vpop.permute.xlu0 %1217
    %1221 = vset.pattern.permute.xlu0 0
    %1222 = vperm.xlu0 %1221, %v460
    %v1223 = vpop.permute.xlu0 %1222
    %1226 = vset.pattern.permute.xlu0 0
    %1227 = vperm.xlu0 %1226, %v461
    %v1228 = vpop.permute.xlu0 %1227
    %1231 = vset.pattern.permute.xlu0 0
    %1232 = vperm.xlu0 %1231, %v462
    %v1233 = vpop.permute.xlu0 %1232
    %1236 = vset.pattern.permute.xlu0 0
    %1237 = vperm.xlu0 %1236, %v463
    %v1238 = vpop.permute.xlu0 %1237
    %1241 = vset.pattern.permute.xlu0 0
    %1242 = vperm.xlu0 %1241, %v464
    %v1243 = vpop.permute.xlu0 %1242
    %1246 = vset.pattern.permute.xlu0 0
    %1247 = vperm.xlu0 %1246, %v465
    %v1248 = vpop.permute.xlu0 %1247
    %1251 = vset.pattern.permute.xlu0 0
    %1252 = vperm.xlu0 %1251, %v466
    %v1253 = vpop.permute.xlu0 %1252
    %1256 = vset.pattern.permute.xlu0 0
    %1257 = vperm.xlu0 %1256, %v467
    %v1258 = vpop.permute.xlu0 %1257
    %v1260 = vadd.f32 %v1188, %v1203
    %v1261 = vadd.f32 %v1189, %v1208
    %v1262 = vadd.f32 %v1190, %v1213
    %v1263 = vadd.f32 %v1191, %v1218
    %v1264 = vadd.f32 %v1192, %v1223
    %v1265 = vadd.f32 %v1193, %v1228
    %v1266 = vadd.f32 %v1194, %v1233
    %v1267 = vadd.f32 %v1195, %v1238
    %v1268 = vadd.f32 %v1196, %v1243
    %v1269 = vadd.f32 %v1197, %v1248
    %v1270 = vadd.f32 %v1198, %v1253
    %v1271 = vadd.f32 %v1199, %v1258
    %v1272 = vadd.f32 %v1260, %v658
    %v1273 = vadd.f32 %v1261, %v663
    %v1274 = vadd.f32 %v1262, %v668
    %v1275 = vadd.f32 %v1263, %v673
    %v1276 = vadd.f32 %v1264, %v678
    %v1277 = vadd.f32 %v1265, %v683
    %v1278 = vadd.f32 %v1266, %v688
    %v1279 = vadd.f32 %v1267, %v693
    %v1280 = vxor.u32 %v1272, 2147483648
    %v1281 = vxor.u32 %v1273, 2147483648
    %v1282 = vxor.u32 %v1274, 2147483648
    %v1283 = vxor.u32 %v1275, 2147483648
    %v1284 = vxor.u32 %v1276, 2147483648
    %v1285 = vxor.u32 %v1277, 2147483648
    %v1286 = vxor.u32 %v1278, 2147483648
    %v1287 = vxor.u32 %v1279, 2147483648
    %v1288 = vmul.f32 %v1280, 1.442695
    %v1289 = vpow.pop %v1288
    %v1290 = vmul.f32 %v1281, 1.442695
    %v1291 = vpow.pop %v1290
    %v1292 = vmul.f32 %v1282, 1.442695
    %v1293 = vpow.pop %v1292
    %v1294 = vmul.f32 %v1283, 1.442695
    %v1295 = vpow.pop %v1294
    %v1296 = vmul.f32 %v1284, 1.442695
    %v1297 = vpow.pop %v1296
    %v1298 = vmul.f32 %v1285, 1.442695
    %v1299 = vpow.pop %v1298
    %v1300 = vmul.f32 %v1286, 1.442695
    %v1301 = vpow.pop %v1300
    %v1302 = vmul.f32 %v1287, 1.442695
    %v1303 = vpow.pop %v1302
    %v1304 = vadd.f32 %v1289, 1.0
    %v1305 = vadd.f32 %v1291, 1.0
    %v1306 = vadd.f32 %v1293, 1.0
    %v1307 = vadd.f32 %v1295, 1.0
    %v1308 = vadd.f32 %v1297, 1.0
    %v1309 = vadd.f32 %v1299, 1.0
    %v1310 = vadd.f32 %v1301, 1.0
    %v1311 = vadd.f32 %v1303, 1.0
    %v1312 = vrcp.pop %v1304
    %v1313 = vmul.f32 1.0, %v1312
    %v1314 = vrcp.pop %v1305
    %v1315 = vmul.f32 1.0, %v1314
    %v1316 = vrcp.pop %v1306
    %v1317 = vmul.f32 1.0, %v1316
    %v1318 = vrcp.pop %v1307
    %v1319 = vmul.f32 1.0, %v1318
    %v1320 = vrcp.pop %v1308
    %v1321 = vmul.f32 1.0, %v1320
    %v1322 = vrcp.pop %v1309
    %v1323 = vmul.f32 1.0, %v1322
    %v1324 = vrcp.pop %v1310
    %v1325 = vmul.f32 1.0, %v1324
    %v1326 = vrcp.pop %v1311
    %v1327 = vmul.f32 1.0, %v1326
    %v1328 = vmul.f32 %v1313, %v698
    %v1329 = vmul.f32 %v1315, %v703
    %v1330 = vmul.f32 %v1317, %v708
    %v1331 = vmul.f32 %v1319, %v713
    %v1332 = vadd.f32 %v1268, %v1328
    %v1333 = vadd.f32 %v1269, %v1329
    %v1334 = vadd.f32 %v1270, %v1330
    %v1335 = vadd.f32 %v1271, %v1331
    %v1336 = vtanh.pop %v1332
    %v1337 = vtanh.pop %v1333
    %v1338 = vtanh.pop %v1334
    %v1339 = vtanh.pop %v1335
    %v1340 = vsub.f32 1.0, %v1321
    %v1341 = vsub.f32 1.0, %v1323
    %v1342 = vsub.f32 1.0, %v1325
    %v1343 = vsub.f32 1.0, %v1327
    %v1344 = vmul.f32 %v1340, %v1336
    %v1345 = vmul.f32 %v1341, %v1337
    %v1346 = vmul.f32 %v1342, %v1338
    %v1347 = vmul.f32 %v1343, %v1339
    %v1348 = vmul.f32 %v1321, %v519
    %v1349 = vmul.f32 %v1323, %v520
    %v1350 = vmul.f32 %v1325, %v521
    %v1351 = vmul.f32 %v1327, %v522
    %v1352 = vadd.f32 %v1344, %v1348
    %v1353 = vadd.f32 %v1345, %v1349
    %v1354 = vadd.f32 %v1346, %v1350
    %v1355 = vadd.f32 %v1347, %v1351
    %1356 = vst.msk [vmem:[#allocation2 + $0x20] sm:$0xff] %vm1070, %v1352
    %1357 = vst.msk [vmem:[#allocation2 + $0x28] sm:$0xff] %vm1070, %v1353
    %1358 = vst.msk [vmem:[#allocation2 + $0x30] sm:$0xff] %vm1070, %v1354
    %1359 = vst.msk [vmem:[#allocation2 + $0x38] sm:$0xff] %vm1070, %v1355
    %1361 = vset.pattern.permute.xlu0 0
    %1362 = vperm.xlu0 %1361, %v496
    %v1363 = vpop.permute.xlu0 %1362
    %1366 = vset.pattern.permute.xlu0 0
    %1367 = vperm.xlu0 %1366, %v497
    %v1368 = vpop.permute.xlu0 %1367
    %1371 = vset.pattern.permute.xlu0 0
    %1372 = vperm.xlu0 %1371, %v498
    %v1373 = vpop.permute.xlu0 %1372
    %1376 = vset.pattern.permute.xlu0 0
    %1377 = vperm.xlu0 %1376, %v499
    %v1378 = vpop.permute.xlu0 %1377
    %v1380 = vmul.f32 %v1363, %v1352
    %v1381 = vmul.f32 %v1368, %v1353
    %v1382 = vmul.f32 %v1373, %v1354
    %v1383 = vmul.f32 %v1378, %v1355
    %v1384 = vsel %vm1070, %v1380, 0.0
    %v1385 = vsel %vm1070, %v1381, 0.0
    %v1386 = vadd.f32 %v1384, %v1385
    %v1387 = vsel %vm1070, %v1382, 0.0
    %v1388 = vadd.f32 %v1386, %v1387
    %v1389 = vsel %vm1070, %v1383, 0.0
    %v1390 = vadd.f32 %v1388, %v1389
    %v1391 = vrot.slane %v1390, 4
    %v1392 = vadd.f32 %v1390, %v1391
    %v1393 = vrot.slane %v1392, 2
    %v1394 = vadd.f32 %v1392, %v1393
    %v1395 = vrot.slane %v1394, 1
    %v1396 = vadd.f32 %v1394, %v1395
    %v1397 = vadd.f32 %v1396, %v1115
    %v1398 = vmax.f32 %v1397, 0.0
    %v1400 = vrot.slane %v1123, 7
    %v1402 = vmin.f32 %v1398, %v1400
    %s1403 = sadd.s32 %s510, 8
    %s1404 = scalar_lea.vmem %s7, %s1403
    %vm1405 = vcmask 9217
    %1406 = vst.msk [vmem:[%s1404 - $0x1] sm:$0x2] %vm1405, %v1402
    %v1408 = vrot.slane %v1402, 1
    %v1410 = vsub.f32 %v1123, %v1408
    %1412 = vset.pattern.permute.xlu0 0
    %1413 = vperm.xlu0 %1412, %v420
    %v1414 = vpop.permute.xlu0 %1413
    %1417 = vset.pattern.permute.xlu0 0
    %1418 = vperm.xlu0 %1417, %v421
    %v1419 = vpop.permute.xlu0 %1418
    %1422 = vset.pattern.permute.xlu0 0
    %1423 = vperm.xlu0 %1422, %v422
    %v1424 = vpop.permute.xlu0 %1423
    %1427 = vset.pattern.permute.xlu0 0
    %1428 = vperm.xlu0 %1427, %v423
    %v1429 = vpop.permute.xlu0 %1428
    %1432 = vset.pattern.permute.xlu0 0
    %1433 = vperm.xlu0 %1432, %v424
    %v1434 = vpop.permute.xlu0 %1433
    %1437 = vset.pattern.permute.xlu0 0
    %1438 = vperm.xlu0 %1437, %v425
    %v1439 = vpop.permute.xlu0 %1438
    %1442 = vset.pattern.permute.xlu0 0
    %1443 = vperm.xlu0 %1442, %v426
    %v1444 = vpop.permute.xlu0 %1443
    %1447 = vset.pattern.permute.xlu0 0
    %1448 = vperm.xlu0 %1447, %v427
    %v1449 = vpop.permute.xlu0 %1448
    %1452 = vset.pattern.permute.xlu0 0
    %1453 = vperm.xlu0 %1452, %v428
    %v1454 = vpop.permute.xlu0 %1453
    %1457 = vset.pattern.permute.xlu0 0
    %1458 = vperm.xlu0 %1457, %v429
    %v1459 = vpop.permute.xlu0 %1458
    %1462 = vset.pattern.permute.xlu0 0
    %1463 = vperm.xlu0 %1462, %v430
    %v1464 = vpop.permute.xlu0 %1463
    %1467 = vset.pattern.permute.xlu0 0
    %1468 = vperm.xlu0 %1467, %v431
    %v1469 = vpop.permute.xlu0 %1468
    %v1471 = vlaneseq
    %v1472 = vshrl.u32 %v1471, 7
    %v1473 = vsub.s32 0, %v1472
    %v1474 = vrot.slane %v1410, %v1473
    %v1475 = vmul.f32 %v1414, %v1474
    %v1476 = vmul.f32 %v1419, %v1474
    %v1477 = vmul.f32 %v1424, %v1474
    %v1478 = vmul.f32 %v1429, %v1474
    %v1479 = vmul.f32 %v1434, %v1474
    %v1480 = vmul.f32 %v1439, %v1474
    %v1481 = vmul.f32 %v1444, %v1474
    %v1482 = vmul.f32 %v1449, %v1474
    %v1483 = vmul.f32 %v1454, %v1474
    %v1484 = vmul.f32 %v1459, %v1474
    %v1485 = vmul.f32 %v1464, %v1474
    %v1486 = vmul.f32 %v1469, %v1474
    %1488 = vset.pattern.permute.xlu0 0
    %1489 = vperm.xlu0 %1488, %v468
    %v1490 = vpop.permute.xlu0 %1489
    %1493 = vset.pattern.permute.xlu0 0
    %1494 = vperm.xlu0 %1493, %v469
    %v1495 = vpop.permute.xlu0 %1494
    %1498 = vset.pattern.permute.xlu0 0
    %1499 = vperm.xlu0 %1498, %v470
    %v1500 = vpop.permute.xlu0 %1499
    %1503 = vset.pattern.permute.xlu0 0
    %1504 = vperm.xlu0 %1503, %v471
    %v1505 = vpop.permute.xlu0 %1504
    %1508 = vset.pattern.permute.xlu0 0
    %1509 = vperm.xlu0 %1508, %v472
    %v1510 = vpop.permute.xlu0 %1509
    %1513 = vset.pattern.permute.xlu0 0
    %1514 = vperm.xlu0 %1513, %v473
    %v1515 = vpop.permute.xlu0 %1514
    %1518 = vset.pattern.permute.xlu0 0
    %1519 = vperm.xlu0 %1518, %v474
    %v1520 = vpop.permute.xlu0 %1519
    %1523 = vset.pattern.permute.xlu0 0
    %1524 = vperm.xlu0 %1523, %v475
    %v1525 = vpop.permute.xlu0 %1524
    %1528 = vset.pattern.permute.xlu0 0
    %1529 = vperm.xlu0 %1528, %v476
    %v1530 = vpop.permute.xlu0 %1529
    %1533 = vset.pattern.permute.xlu0 0
    %1534 = vperm.xlu0 %1533, %v477
    %v1535 = vpop.permute.xlu0 %1534
    %1538 = vset.pattern.permute.xlu0 0
    %1539 = vperm.xlu0 %1538, %v478
    %v1540 = vpop.permute.xlu0 %1539
    %1543 = vset.pattern.permute.xlu0 0
    %1544 = vperm.xlu0 %1543, %v479
    %v1545 = vpop.permute.xlu0 %1544
    %v1547 = vadd.f32 %v1475, %v1490
    %v1548 = vadd.f32 %v1476, %v1495
    %v1549 = vadd.f32 %v1477, %v1500
    %v1550 = vadd.f32 %v1478, %v1505
    %v1551 = vadd.f32 %v1479, %v1510
    %v1552 = vadd.f32 %v1480, %v1515
    %v1553 = vadd.f32 %v1481, %v1520
    %v1554 = vadd.f32 %v1482, %v1525
    %v1555 = vadd.f32 %v1483, %v1530
    %v1556 = vadd.f32 %v1484, %v1535
    %v1557 = vadd.f32 %v1485, %v1540
    %v1558 = vadd.f32 %v1486, %v1545
    %v1559 = vadd.f32 %v1547, %v718
    %v1560 = vadd.f32 %v1548, %v723
    %v1561 = vadd.f32 %v1549, %v728
    %v1562 = vadd.f32 %v1550, %v733
    %v1563 = vadd.f32 %v1551, %v738
    %v1564 = vadd.f32 %v1552, %v743
    %v1565 = vadd.f32 %v1553, %v748
    %v1566 = vadd.f32 %v1554, %v753
    %v1567 = vxor.u32 %v1559, 2147483648
    %v1568 = vxor.u32 %v1560, 2147483648
    %v1569 = vxor.u32 %v1561, 2147483648
    %v1570 = vxor.u32 %v1562, 2147483648
    %v1571 = vxor.u32 %v1563, 2147483648
    %v1572 = vxor.u32 %v1564, 2147483648
    %v1573 = vxor.u32 %v1565, 2147483648
    %v1574 = vxor.u32 %v1566, 2147483648
    %v1575 = vmul.f32 %v1567, 1.442695
    %v1576 = vpow.pop %v1575
    %v1577 = vmul.f32 %v1568, 1.442695
    %v1578 = vpow.pop %v1577
    %v1579 = vmul.f32 %v1569, 1.442695
    %v1580 = vpow.pop %v1579
    %v1581 = vmul.f32 %v1570, 1.442695
    %v1582 = vpow.pop %v1581
    %v1583 = vmul.f32 %v1571, 1.442695
    %v1584 = vpow.pop %v1583
    %v1585 = vmul.f32 %v1572, 1.442695
    %v1586 = vpow.pop %v1585
    %v1587 = vmul.f32 %v1573, 1.442695
    %v1588 = vpow.pop %v1587
    %v1589 = vmul.f32 %v1574, 1.442695
    %v1590 = vpow.pop %v1589
    %v1591 = vadd.f32 %v1576, 1.0
    %v1592 = vadd.f32 %v1578, 1.0
    %v1593 = vadd.f32 %v1580, 1.0
    %v1594 = vadd.f32 %v1582, 1.0
    %v1595 = vadd.f32 %v1584, 1.0
    %v1596 = vadd.f32 %v1586, 1.0
    %v1597 = vadd.f32 %v1588, 1.0
    %v1598 = vadd.f32 %v1590, 1.0
    %v1599 = vrcp.pop %v1591
    %v1600 = vmul.f32 1.0, %v1599
    %v1601 = vrcp.pop %v1592
    %v1602 = vmul.f32 1.0, %v1601
    %v1603 = vrcp.pop %v1593
    %v1604 = vmul.f32 1.0, %v1603
    %v1605 = vrcp.pop %v1594
    %v1606 = vmul.f32 1.0, %v1605
    %v1607 = vrcp.pop %v1595
    %v1608 = vmul.f32 1.0, %v1607
    %v1609 = vrcp.pop %v1596
    %v1610 = vmul.f32 1.0, %v1609
    %v1611 = vrcp.pop %v1597
    %v1612 = vmul.f32 1.0, %v1611
    %v1613 = vrcp.pop %v1598
    %v1614 = vmul.f32 1.0, %v1613
    %v1615 = vmul.f32 %v1600, %v758
    %v1616 = vmul.f32 %v1602, %v763
    %v1617 = vmul.f32 %v1604, %v768
    %v1618 = vmul.f32 %v1606, %v773
    %v1619 = vadd.f32 %v1555, %v1615
    %v1620 = vadd.f32 %v1556, %v1616
    %v1621 = vadd.f32 %v1557, %v1617
    %v1622 = vadd.f32 %v1558, %v1618
    %v1623 = vtanh.pop %v1619
    %v1624 = vtanh.pop %v1620
    %v1625 = vtanh.pop %v1621
    %v1626 = vtanh.pop %v1622
    %v1627 = vsub.f32 1.0, %v1608
    %v1628 = vsub.f32 1.0, %v1610
    %v1629 = vsub.f32 1.0, %v1612
    %v1630 = vsub.f32 1.0, %v1614
    %v1631 = vmul.f32 %v1627, %v1623
    %v1632 = vmul.f32 %v1628, %v1624
    %v1633 = vmul.f32 %v1629, %v1625
    %v1634 = vmul.f32 %v1630, %v1626
    %v1635 = vmul.f32 %v1608, %v523
    %v1636 = vmul.f32 %v1610, %v524
    %v1637 = vmul.f32 %v1612, %v525
    %v1638 = vmul.f32 %v1614, %v526
    %v1639 = vadd.f32 %v1631, %v1635
    %v1640 = vadd.f32 %v1632, %v1636
    %v1641 = vadd.f32 %v1633, %v1637
    %v1642 = vadd.f32 %v1634, %v1638
    %1643 = vst.msk [vmem:[#allocation2 + $0x40] sm:$0xff] %vm1070, %v1639
    %1644 = vst.msk [vmem:[#allocation2 + $0x48] sm:$0xff] %vm1070, %v1640
    %1645 = vst.msk [vmem:[#allocation2 + $0x50] sm:$0xff] %vm1070, %v1641
    %1646 = vst.msk [vmem:[#allocation2 + $0x58] sm:$0xff] %vm1070, %v1642
    %1648 = vset.pattern.permute.xlu0 0
    %1649 = vperm.xlu0 %1648, %v500
    %v1650 = vpop.permute.xlu0 %1649
    %1653 = vset.pattern.permute.xlu0 0
    %1654 = vperm.xlu0 %1653, %v501
    %v1655 = vpop.permute.xlu0 %1654
    %1658 = vset.pattern.permute.xlu0 0
    %1659 = vperm.xlu0 %1658, %v502
    %v1660 = vpop.permute.xlu0 %1659
    %1663 = vset.pattern.permute.xlu0 0
    %1664 = vperm.xlu0 %1663, %v503
    %v1665 = vpop.permute.xlu0 %1664
    %v1667 = vmul.f32 %v1650, %v1639
    %v1668 = vmul.f32 %v1655, %v1640
    %v1669 = vmul.f32 %v1660, %v1641
    %v1670 = vmul.f32 %v1665, %v1642
    %v1671 = vsel %vm1070, %v1667, 0.0
    %v1672 = vsel %vm1070, %v1668, 0.0
    %v1673 = vadd.f32 %v1671, %v1672
    %v1674 = vsel %vm1070, %v1669, 0.0
    %v1675 = vadd.f32 %v1673, %v1674
    %v1676 = vsel %vm1070, %v1670, 0.0
    %v1677 = vadd.f32 %v1675, %v1676
    %v1678 = vrot.slane %v1677, 4
    %v1679 = vadd.f32 %v1677, %v1678
    %v1680 = vrot.slane %v1679, 2
    %v1681 = vadd.f32 %v1679, %v1680
    %v1682 = vrot.slane %v1681, 1
    %v1683 = vadd.f32 %v1681, %v1682
    %v1684 = vadd.f32 %v1683, %v1115
    %v1685 = vmax.f32 %v1684, 0.0
    %v1687 = vrot.slane %v1410, 6
    %v1689 = vmin.f32 %v1685, %v1687
    %s1690 = sadd.s32 %s510, 16
    %s1691 = scalar_lea.vmem %s7, %s1690
    %vm1692 = vcmask 10242
    %1693 = vst.msk [vmem:[%s1691 - $0x2] sm:$0x4] %vm1692, %v1689
    %v1695 = vrot.slane %v1689, 2
    %v1697 = vsub.f32 %v1410, %v1695
    %1699 = vset.pattern.permute.xlu0 0
    %1700 = vperm.xlu0 %1699, %v432
    %v1701 = vpop.permute.xlu0 %1700
    %1704 = vset.pattern.permute.xlu0 0
    %1705 = vperm.xlu0 %1704, %v433
    %v1706 = vpop.permute.xlu0 %1705
    %1709 = vset.pattern.permute.xlu0 0
    %1710 = vperm.xlu0 %1709, %v434
    %v1711 = vpop.permute.xlu0 %1710
    %1714 = vset.pattern.permute.xlu0 0
    %1715 = vperm.xlu0 %1714, %v435
    %v1716 = vpop.permute.xlu0 %1715
    %1719 = vset.pattern.permute.xlu0 0
    %1720 = vperm.xlu0 %1719, %v436
    %v1721 = vpop.permute.xlu0 %1720
    %1724 = vset.pattern.permute.xlu0 0
    %1725 = vperm.xlu0 %1724, %v437
    %v1726 = vpop.permute.xlu0 %1725
    %1729 = vset.pattern.permute.xlu0 0
    %1730 = vperm.xlu0 %1729, %v438
    %v1731 = vpop.permute.xlu0 %1730
    %1734 = vset.pattern.permute.xlu0 0
    %1735 = vperm.xlu0 %1734, %v439
    %v1736 = vpop.permute.xlu0 %1735
    %1739 = vset.pattern.permute.xlu0 0
    %1740 = vperm.xlu0 %1739, %v440
    %v1741 = vpop.permute.xlu0 %1740
    %1744 = vset.pattern.permute.xlu0 0
    %1745 = vperm.xlu0 %1744, %v441
    %v1746 = vpop.permute.xlu0 %1745
    %1749 = vset.pattern.permute.xlu0 0
    %1750 = vperm.xlu0 %1749, %v442
    %v1751 = vpop.permute.xlu0 %1750
    %1754 = vset.pattern.permute.xlu0 0
    %1755 = vperm.xlu0 %1754, %v443
    %v1756 = vpop.permute.xlu0 %1755
    %v1758 = vlaneseq
    %v1759 = vshrl.u32 %v1758, 7
    %v1760 = vsub.s32 0, %v1759
    %v1761 = vrot.slane %v1697, %v1760
    %v1762 = vmul.f32 %v1701, %v1761
    %v1763 = vmul.f32 %v1706, %v1761
    %v1764 = vmul.f32 %v1711, %v1761
    %v1765 = vmul.f32 %v1716, %v1761
    %v1766 = vmul.f32 %v1721, %v1761
    %v1767 = vmul.f32 %v1726, %v1761
    %v1768 = vmul.f32 %v1731, %v1761
    %v1769 = vmul.f32 %v1736, %v1761
    %v1770 = vmul.f32 %v1741, %v1761
    %v1771 = vmul.f32 %v1746, %v1761
    %v1772 = vmul.f32 %v1751, %v1761
    %v1773 = vmul.f32 %v1756, %v1761
    %1775 = vset.pattern.permute.xlu0 0
    %1776 = vperm.xlu0 %1775, %v480
    %v1777 = vpop.permute.xlu0 %1776
    %1780 = vset.pattern.permute.xlu0 0
    %1781 = vperm.xlu0 %1780, %v481
    %v1782 = vpop.permute.xlu0 %1781
    %1785 = vset.pattern.permute.xlu0 0
    %1786 = vperm.xlu0 %1785, %v482
    %v1787 = vpop.permute.xlu0 %1786
    %1790 = vset.pattern.permute.xlu0 0
    %1791 = vperm.xlu0 %1790, %v483
    %v1792 = vpop.permute.xlu0 %1791
    %1795 = vset.pattern.permute.xlu0 0
    %1796 = vperm.xlu0 %1795, %v484
    %v1797 = vpop.permute.xlu0 %1796
    %1800 = vset.pattern.permute.xlu0 0
    %1801 = vperm.xlu0 %1800, %v485
    %v1802 = vpop.permute.xlu0 %1801
    %1805 = vset.pattern.permute.xlu0 0
    %1806 = vperm.xlu0 %1805, %v486
    %v1807 = vpop.permute.xlu0 %1806
    %1810 = vset.pattern.permute.xlu0 0
    %1811 = vperm.xlu0 %1810, %v487
    %v1812 = vpop.permute.xlu0 %1811
    %1815 = vset.pattern.permute.xlu0 0
    %1816 = vperm.xlu0 %1815, %v488
    %v1817 = vpop.permute.xlu0 %1816
    %1820 = vset.pattern.permute.xlu0 0
    %1821 = vperm.xlu0 %1820, %v489
    %v1822 = vpop.permute.xlu0 %1821
    %1825 = vset.pattern.permute.xlu0 0
    %1826 = vperm.xlu0 %1825, %v490
    %v1827 = vpop.permute.xlu0 %1826
    %1830 = vset.pattern.permute.xlu0 0
    %1831 = vperm.xlu0 %1830, %v491
    %v1832 = vpop.permute.xlu0 %1831
    %v1834 = vadd.f32 %v1762, %v1777
    %v1835 = vadd.f32 %v1763, %v1782
    %v1836 = vadd.f32 %v1764, %v1787
    %v1837 = vadd.f32 %v1765, %v1792
    %v1838 = vadd.f32 %v1766, %v1797
    %v1839 = vadd.f32 %v1767, %v1802
    %v1840 = vadd.f32 %v1768, %v1807
    %v1841 = vadd.f32 %v1769, %v1812
    %v1842 = vadd.f32 %v1770, %v1817
    %v1843 = vadd.f32 %v1771, %v1822
    %v1844 = vadd.f32 %v1772, %v1827
    %v1845 = vadd.f32 %v1773, %v1832
    %v1846 = vadd.f32 %v1834, %v778
    %v1847 = vadd.f32 %v1835, %v783
    %v1848 = vadd.f32 %v1836, %v788
    %v1849 = vadd.f32 %v1837, %v793
    %v1850 = vadd.f32 %v1838, %v798
    %v1851 = vadd.f32 %v1839, %v803
    %v1852 = vadd.f32 %v1840, %v808
    %v1853 = vadd.f32 %v1841, %v813
    %v1854 = vxor.u32 %v1846, 2147483648
    %v1855 = vxor.u32 %v1847, 2147483648
    %v1856 = vxor.u32 %v1848, 2147483648
    %v1857 = vxor.u32 %v1849, 2147483648
    %v1858 = vxor.u32 %v1850, 2147483648
    %v1859 = vxor.u32 %v1851, 2147483648
    %v1860 = vxor.u32 %v1852, 2147483648
    %v1861 = vxor.u32 %v1853, 2147483648
    %v1862 = vmul.f32 %v1854, 1.442695
    %v1863 = vpow.pop %v1862
    %v1864 = vmul.f32 %v1855, 1.442695
    %v1865 = vpow.pop %v1864
    %v1866 = vmul.f32 %v1856, 1.442695
    %v1867 = vpow.pop %v1866
    %v1868 = vmul.f32 %v1857, 1.442695
    %v1869 = vpow.pop %v1868
    %v1870 = vmul.f32 %v1858, 1.442695
    %v1871 = vpow.pop %v1870
    %v1872 = vmul.f32 %v1859, 1.442695
    %v1873 = vpow.pop %v1872
    %v1874 = vmul.f32 %v1860, 1.442695
    %v1875 = vpow.pop %v1874
    %v1876 = vmul.f32 %v1861, 1.442695
    %v1877 = vpow.pop %v1876
    %v1878 = vadd.f32 %v1863, 1.0
    %v1879 = vadd.f32 %v1865, 1.0
    %v1880 = vadd.f32 %v1867, 1.0
    %v1881 = vadd.f32 %v1869, 1.0
    %v1882 = vadd.f32 %v1871, 1.0
    %v1883 = vadd.f32 %v1873, 1.0
    %v1884 = vadd.f32 %v1875, 1.0
    %v1885 = vadd.f32 %v1877, 1.0
    %v1886 = vrcp.pop %v1878
    %v1887 = vmul.f32 1.0, %v1886
    %v1888 = vrcp.pop %v1879
    %v1889 = vmul.f32 1.0, %v1888
    %v1890 = vrcp.pop %v1880
    %v1891 = vmul.f32 1.0, %v1890
    %v1892 = vrcp.pop %v1881
    %v1893 = vmul.f32 1.0, %v1892
    %v1894 = vrcp.pop %v1882
    %v1895 = vmul.f32 1.0, %v1894
    %v1896 = vrcp.pop %v1883
    %v1897 = vmul.f32 1.0, %v1896
    %v1898 = vrcp.pop %v1884
    %v1899 = vmul.f32 1.0, %v1898
    %v1900 = vrcp.pop %v1885
    %v1901 = vmul.f32 1.0, %v1900
    %v1902 = vmul.f32 %v1887, %v818
    %v1903 = vmul.f32 %v1889, %v823
    %v1904 = vmul.f32 %v1891, %v828
    %v1905 = vmul.f32 %v1893, %v833
    %v1906 = vadd.f32 %v1842, %v1902
    %v1907 = vadd.f32 %v1843, %v1903
    %v1908 = vadd.f32 %v1844, %v1904
    %v1909 = vadd.f32 %v1845, %v1905
    %v1910 = vtanh.pop %v1906
    %v1911 = vtanh.pop %v1907
    %v1912 = vtanh.pop %v1908
    %v1913 = vtanh.pop %v1909
    %v1914 = vsub.f32 1.0, %v1895
    %v1915 = vsub.f32 1.0, %v1897
    %v1916 = vsub.f32 1.0, %v1899
    %v1917 = vsub.f32 1.0, %v1901
    %v1918 = vmul.f32 %v1914, %v1910
    %v1919 = vmul.f32 %v1915, %v1911
    %v1920 = vmul.f32 %v1916, %v1912
    %v1921 = vmul.f32 %v1917, %v1913
    %v1922 = vmul.f32 %v1895, %v527
    %v1923 = vmul.f32 %v1897, %v528
    %v1924 = vmul.f32 %v1899, %v529
    %v1925 = vmul.f32 %v1901, %v530
    %v1926 = vadd.f32 %v1918, %v1922
    %v1927 = vadd.f32 %v1919, %v1923
    %v1928 = vadd.f32 %v1920, %v1924
    %v1929 = vadd.f32 %v1921, %v1925
    %1930 = vst.msk [vmem:[#allocation2 + $0x60] sm:$0xff] %vm1070, %v1926
    %1931 = vst.msk [vmem:[#allocation2 + $0x68] sm:$0xff] %vm1070, %v1927
    %1932 = vst.msk [vmem:[#allocation2 + $0x70] sm:$0xff] %vm1070, %v1928
    %1933 = vst.msk [vmem:[#allocation2 + $0x78] sm:$0xff] %vm1070, %v1929
    %1935 = vset.pattern.permute.xlu0 0
    %1936 = vperm.xlu0 %1935, %v504
    %v1937 = vpop.permute.xlu0 %1936
    %1940 = vset.pattern.permute.xlu0 0
    %1941 = vperm.xlu0 %1940, %v505
    %v1942 = vpop.permute.xlu0 %1941
    %1945 = vset.pattern.permute.xlu0 0
    %1946 = vperm.xlu0 %1945, %v506
    %v1947 = vpop.permute.xlu0 %1946
    %1950 = vset.pattern.permute.xlu0 0
    %1951 = vperm.xlu0 %1950, %v507
    %v1952 = vpop.permute.xlu0 %1951
    %v1954 = vmul.f32 %v1937, %v1926
    %v1955 = vmul.f32 %v1942, %v1927
    %v1956 = vmul.f32 %v1947, %v1928
    %v1957 = vmul.f32 %v1952, %v1929
    %v1958 = vsel %vm1070, %v1954, 0.0
    %v1959 = vsel %vm1070, %v1955, 0.0
    %v1960 = vadd.f32 %v1958, %v1959
    %v1961 = vsel %vm1070, %v1956, 0.0
    %v1962 = vadd.f32 %v1960, %v1961
    %v1963 = vsel %vm1070, %v1957, 0.0
    %v1964 = vadd.f32 %v1962, %v1963
    %v1965 = vrot.slane %v1964, 4
    %v1966 = vadd.f32 %v1964, %v1965
    %v1967 = vrot.slane %v1966, 2
    %v1968 = vadd.f32 %v1966, %v1967
    %v1969 = vrot.slane %v1968, 1
    %v1970 = vadd.f32 %v1968, %v1969
    %v1971 = vadd.f32 %v1970, %v1115
    %v1972 = vmax.f32 %v1971, 0.0
    %v1974 = vrot.slane %v1697, 5
    %v1976 = vmin.f32 %v1972, %v1974
    %s1977 = sadd.s32 %s510, 24
    %s1978 = scalar_lea.vmem %s7, %s1977
    %vm1979 = vcmask 11267
    %1980 = vst.msk [vmem:[%s1978 - $0x3] sm:$0x8] %vm1979, %v1976
  $region42: #{_forward_impl.1} parent=0 // loop_footer
    %s512 = sadd.s32 %s510, 1
  $region43: #{_forward_impl.1} parent=0 // loop_footer_branch
    %509 = sbr.rel target = $region39
  $region44: #{_forward_impl.1} parent=0 // loop_exit
    _
  // Predicated region
  $region45: #{_forward_impl.1} parent=0 // pred_check
    _
  $region46: #{_forward_impl.1} parent=0 // pred_check_branch
    %1982 = sbr.rel (0) target = $region48
  $region47: #{_forward_impl.1} parent=0 // pred_region
    _
  $region48: #{_forward_impl.1} parent=0 // pred_fallthru
    _
  // Predicated region
  $region49: #{_forward_impl.1} parent=0 // pred_check
    _
  $region50: #{_forward_impl.1} parent=0 // pred_check_branch
    %1984 = sbr.rel (0) target = $region52
  $region51: #{_forward_impl.1} parent=0 // pred_region
    _
  $region52: #{_forward_impl.1} parent=0 // pred_fallthru
    _

</llo_original>
